<compile_context>
chip_gen: v7x
topology: tpu7x:2x2x1
jax: 0.10.0
libtpu: 0.0.40
codegen_flags: <defaults>
</compile_context>

<pallas_src>
import functools

import numpy as np
import jax
import jax.numpy as jnp
from jax import lax
from jax.experimental import pallas as pl
from jax.experimental.pallas import tpu as pltpu

jax.config.update("jax_default_matmul_precision", "highest")

EPS = 1e-5

# Fixed Sobel filters (compile-time constants; used only by the reference and
# for documentation -- the kernel uses their separable form).
_FX = np.array([[1, 0, -1], [2, 0, -2], [1, 0, -1]], dtype=np.float32)
_FY = np.array([[1, 2, 1], [0, 0, 0], [-1, -2, -1]], dtype=np.float32)
_FZ = np.array([[[1, 2, 1], [2, 4, 2], [1, 2, 1]],
                [[0, 0, 0], [0, 0, 0], [0, 0, 0]],
                [[-1, -2, -1], [-2, -4, -2], [-1, -2, -1]]], dtype=np.float32)

# In-plane tap offsets (oy, ox) that need a boundary mask (center excluded).
_TAP_ORDER = tuple((oy, ox) for oy in (-1, 0, 1) for ox in (-1, 0, 1)
                   if (oy, ox) != (0, 0))


@functools.cache
def _roll_sign() -> int:
    """Probe pltpu.roll's rotation convention on this backend.

    Returns +1 if pltpu.roll matches np.roll (out[i] = x[(i - shift) % n]),
    -1 if it rotates the opposite way, 0 to fall back to jnp.roll in-kernel.
    """
    x = np.arange(8 * 128, dtype=np.float32).reshape(8, 128)

    def k(x_ref, o_ref):
        o_ref[...] = pltpu.roll(x_ref[...], 1, 1)

    try:
        out = pl.pallas_call(
            k, out_shape=jax.ShapeDtypeStruct((8, 128), jnp.float32))(x)
        out = np.asarray(jax.block_until_ready(out))
    except Exception:  # pragma: no cover - safety net only
        return 0
    if np.array_equal(out, np.roll(x, 1, axis=1)):
        return 1
    if np.array_equal(out, np.roll(x, -1, axis=1)):
        return -1
    return 0


def _make_tap_masks(H, W):
    """(8, H*W) float32 validity masks for the 8 non-center in-plane taps."""
    hh = np.arange(H).reshape(H, 1)
    ww = np.arange(W).reshape(1, W)
    bank = []
    for oy, ox in _TAP_ORDER:
        valid = ((hh + oy >= 0) & (hh + oy < H) &
                 (ww + ox >= 0) & (ww + ox < W))
        bank.append(valid.reshape(H * W).astype(np.float32))
    return np.stack(bank, axis=0)


def esam_kernel(x_ref, mask_ref, wf_ref, ch_ref, sc_ref, out_ref,
                acc0_ref, acc1_ref, acc2_ref, *, W, roll_sign):
    # x_ref   : (1, C, D, HW) VMEM  one batch element, H*W flattened (lane-dense)
    # mask_ref: (8, HW)       VMEM  0/1 boundary masks for the 8 in-plane taps
    # wf_ref  : (C*27,)       SMEM  conv1 taps folded through conv2 [c,kz,ky,kx]
    # ch_ref  : (3*C,)        SMEM  [bn_scale | bn_shift | w2]
    # sc_ref  : (8,)          SMEM  Sobel-BN + final-BN scalars
    # out_ref : (1, D, HW)    VMEM
    # acc*_ref: (D, HW)       VMEM  per-kz accumulators (re-init every step)
    C = x_ref.shape[1]
    D = x_ref.shape[2]
    HW = x_ref.shape[3]

    def roll_flat(a, shift):
        # np.roll semantics: out[..., p] = a[..., (p - shift) % HW]
        shift = shift % HW
        if shift == 0:
            return a
        if roll_sign == 1:
            return pltpu.roll(a, shift, 1)
        if roll_sign == -1:
            return pltpu.roll(a, (HW - shift) % HW, 1)
        return jnp.roll(a, shift, axis=1)          # safe fallback

    def tap(a, oy, ox):
        # tap(a)[d, h*W+w] = a[d, (h+oy)*W + (w+ox)], zero outside the HxW box.
        if oy == 0 and ox == 0:
            return a
        idx = _TAP_ORDER.index((oy, ox))
        m = mask_ref[idx:idx + 1, :]               # (1, HW), sublane-broadcast
        return roll_flat(a, -(oy * W + ox)) * m

    def tap_d(a, od):
        # tap_d(a)[d] = a[d + od], zero-padded along D (sublane axis).
        if od > 0:
            return jnp.concatenate(
                [a[od:, :], jnp.zeros((od, HW), jnp.float32)], axis=0)
        return jnp.concatenate(
            [jnp.zeros((-od, HW), jnp.float32), a[:D + od, :]], axis=0)

    # ---- Sobel gate on the channel-sum plane (separable stencils) ----------
    # The fixed Sobel filters are repeated across input channels, so each
    # Sobel conv acts on xs = sum_c x_c.
    xs = lax.fori_loop(1, C, lambda c, acc: acc + x_ref[0, c], x_ref[0, 0])

    sw = tap(xs, 0, -1) + 2.0 * xs + tap(xs, 0, 1)      # [1,2,1] along W
    sh = tap(xs, -1, 0) + 2.0 * xs + tap(xs, 1, 0)      # [1,2,1] along H
    shw = tap(sw, -1, 0) + 2.0 * sw + tap(sw, 1, 0)     # [1,2,1] along H of sw

    gx = tap(sh, 0, -1) - tap(sh, 0, 1)                 # central diff along W
    gy = tap(sw, -1, 0) - tap(sw, 1, 0)                 # central diff along H
    gz = tap_d(shw, -1) - tap_d(shw, 1)                 # central diff along D

    # Per-conv BatchNorm3d(1) folded into scale/shift scalars (SMEM).
    gx = gx * sc_ref[0] + sc_ref[1]
    gy = gy * sc_ref[2] + sc_ref[3]
    gz = gz * sc_ref[4] + sc_ref[5]
    gate = jax.nn.sigmoid(jnp.sqrt(gx * gx + gy * gy + gz * gz))   # (D, HW)

    # ---- per-channel y1 = relu(bn(gate*x)); conv1 folded through conv2 -----
    # Full re-init every grid step (multi-TC / "parallel" safe).
    zero_plane = jnp.zeros((D, HW), jnp.float32)
    acc0_ref[...] = zero_plane
    acc1_ref[...] = zero_plane
    acc2_ref[...] = zero_plane

    def channel_body(c, carry):
        xc = x_ref[0, c]                                           # (D, HW)
        y1 = jnp.maximum(gate * xc * ch_ref[c] + ch_ref[C + c], 0.0)
        p0 = zero_plane
        p1 = ch_ref[2 * C + c] * xc        # residual x.w2 goes with the kz=1 path
        p2 = zero_plane
        for ky in range(3):
            for kx in range(3):
                yt = tap(y1, ky - 1, kx - 1)
                base = c * 27 + ky * 3 + kx
                p0 = p0 + wf_ref[base] * yt
                p1 = p1 + wf_ref[base + 9] * yt
                p2 = p2 + wf_ref[base + 18] * yt
        acc0_ref[...] += p0
        acc1_ref[...] += p1
        acc2_ref[...] += p2
        return carry

    lax.fori_loop(0, C, channel_body, 0)

    # out[d] = sum_kz acc_kz[d + kz - 1]  (the kz taps realized as D shifts),
    # then final BatchNorm3d(1) + ReLU (b1.w2 + b2 folded into sc_ref[7]).
    o = tap_d(acc0_ref[...], -1) + acc1_ref[...] + tap_d(acc2_ref[...], 1)
    out_ref[...] = jnp.maximum(o * sc_ref[6] + sc_ref[7], 0.0)[jnp.newaxis]


def _fold_bn(gamma, beta, mean, var):
    scale = gamma / jnp.sqrt(var + EPS)
    return scale, beta - mean * scale


def esam_pallas(x_ncdhw, p):
    N, C, D, H, W = x_ncdhw.shape
    HW = H * W

    # Lane-dense view: merge H and W (free reshape in HBM).
    x_flat = x_ncdhw.reshape(N, C, D, HW).astype(jnp.float32)

    # conv1 folded through conv2: wf[i,kz,ky,kx] = sum_o w2[o] * w1[o,i,kz,ky,kx]
    w2 = p['conv2_w'].reshape(C).astype(jnp.float32)
    wf = jnp.einsum('oizyx,o->izyx', p['conv1_w'].astype(jnp.float32), w2)
    wf = wf.reshape(C * 27)

    bn_s, bn_sh = _fold_bn(p['bn_g'], p['bn_b'], p['bn_m'], p['bn_v'])
    ch = jnp.concatenate([bn_s, bn_sh, w2]).astype(jnp.float32)      # (3C,)

    sx = _fold_bn(p['bnx_g'], p['bnx_b'], p['bnx_m'], p['bnx_v'])
    sy = _fold_bn(p['bny_g'], p['bny_b'], p['bny_m'], p['bny_v'])
    sz = _fold_bn(p['bnz_g'], p['bnz_b'], p['bnz_m'], p['bnz_v'])
    ban_s, ban_sh = _fold_bn(p['ban_g'], p['ban_b'], p['ban_m'], p['ban_v'])
    # constant term (b1 . w2 + b2) pushed through the final BN shift:
    const = jnp.sum(p['conv1_b'] * w2) + p['conv2_b'][0]
    sc = jnp.concatenate([sx[0], sx[1], sy[0], sy[1], sz[0], sz[1],
                          ban_s, ban_sh + ban_s * const]).astype(jnp.float32)

    masks = jnp.asarray(_make_tap_masks(H, W))                       # (8, HW)

    kernel = functools.partial(esam_kernel, W=W, roll_sign=_roll_sign())

    out = pl.pallas_call(
        kernel,
        out_shape=jax.ShapeDtypeStruct((N, D, HW), jnp.float32),
        grid_spec=pltpu.PrefetchScalarGridSpec(
            num_scalar_prefetch=0,
            grid=(N,),
            in_specs=[
                pl.BlockSpec((1, C, D, HW), lambda n: (n, 0, 0, 0)),
                pl.BlockSpec((8, HW), lambda n: (0, 0)),
                pl.BlockSpec(memory_space=pltpu.MemorySpace.SMEM),
                pl.BlockSpec(memory_space=pltpu.MemorySpace.SMEM),
                pl.BlockSpec(memory_space=pltpu.MemorySpace.SMEM),
            ],
            out_specs=pl.BlockSpec((1, D, HW), lambda n: (n, 0, 0)),
            scratch_shapes=[pltpu.VMEM((D, HW), jnp.float32)] * 3,
        ),
        compiler_params=pltpu.CompilerParams(
            dimension_semantics=("parallel",),
            vmem_limit_bytes=32 * 1024 * 1024),
    )(x_flat, masks, wf, ch, sc)

    return out.reshape(N, 1, D, H, W)


# ---------------- pure-JAX reference (for correctness check) -----------------
def _conv3d(x, w, padding):
    return lax.conv_general_dilated(
        x, w, window_strides=(1, 1, 1), padding=padding,
        dimension_numbers=('NCDHW', 'OIDHW', 'NCDHW'),
        precision=lax.Precision.HIGHEST)


def _bn_eval(v, gamma, beta, mean, var):
    shp = (1, -1, 1, 1, 1)
    return ((v - mean.reshape(shp)) / jnp.sqrt(var.reshape(shp) + EPS)
            * gamma.reshape(shp) + beta.reshape(shp))


def esam_ref(x, p):
    C = x.shape[1]
    fx = jnp.broadcast_to(jnp.asarray(_FX).reshape(1, 1, 1, 3, 3), (1, C, 1, 3, 3))
    fy = jnp.broadcast_to(jnp.asarray(_FY).reshape(1, 1, 1, 3, 3), (1, C, 1, 3, 3))
    fz = jnp.broadcast_to(jnp.asarray(_FZ).reshape(1, 1, 3, 3, 3), (1, C, 3, 3, 3))
    gx = _bn_eval(_conv3d(x, fx, [(0, 0), (1, 1), (1, 1)]),
                  p['bnx_g'], p['bnx_b'], p['bnx_m'], p['bnx_v'])
    gy = _bn_eval(_conv3d(x, fy, [(0, 0), (1, 1), (1, 1)]),
                  p['bny_g'], p['bny_b'], p['bny_m'], p['bny_v'])
    gz = _bn_eval(_conv3d(x, fz, [(1, 1), (1, 1), (1, 1)]),
                  p['bnz_g'], p['bnz_b'], p['bnz_m'], p['bnz_v'])
    g = jnp.sqrt(gx ** 2 + gy ** 2 + gz ** 2)
    y = jax.nn.sigmoid(g) * x
    y = jax.nn.relu(_bn_eval(y, p['bn_g'], p['bn_b'], p['bn_m'], p['bn_v']))
    y = _conv3d(y, p['conv1_w'], [(1, 1)] * 3) + p['conv1_b'].reshape(1, -1, 1, 1, 1)
    y = x + y
    y = _conv3d(y, p['conv2_w'], [(0, 0)] * 3) + p['conv2_b'].reshape(1, 1, 1, 1, 1)
    y = jax.nn.relu(_bn_eval(y, p['ban_g'], p['ban_b'], p['ban_m'], p['ban_v']))
    return y


if __name__ == "__main__":
    N, C, D, H, W = 2, 4, 8, 16, 16

    key = jax.random.PRNGKey(0)
    ks = jax.random.split(key, 25)

    def u(k, shape, lo, hi):
        return jax.random.uniform(k, shape, jnp.float32, lo, hi)

    def nrm(k, shape, s=0.1):
        return s * jax.random.normal(k, shape, jnp.float32)

    p = dict(
        conv1_w=nrm(ks[0], (C, C, 3, 3, 3)),
        conv1_b=nrm(ks[1], (C,)),
        conv2_w=nrm(ks[2], (1, C, 1, 1, 1)),
        conv2_b=nrm(ks[3], (1,)),
        bn_g=u(ks[4], (C,), 0.5, 1.5), bn_b=nrm(ks[5], (C,)),
        bn_m=nrm(ks[6], (C,)), bn_v=u(ks[7], (C,), 0.5, 1.5),
        ban_g=u(ks[8], (1,), 0.5, 1.5), ban_b=nrm(ks[9], (1,)),
        ban_m=nrm(ks[10], (1,)), ban_v=u(ks[11], (1,), 0.5, 1.5),
        bnx_g=u(ks[12], (1,), 0.5, 1.5), bnx_b=nrm(ks[13], (1,)),
        bnx_m=nrm(ks[14], (1,)), bnx_v=u(ks[15], (1,), 0.5, 1.5),
        bny_g=u(ks[16], (1,), 0.5, 1.5), bny_b=nrm(ks[17], (1,)),
        bny_m=nrm(ks[18], (1,)), bny_v=u(ks[19], (1,), 0.5, 1.5),
        bnz_g=u(ks[20], (1,), 0.5, 1.5), bnz_b=nrm(ks[21], (1,)),
        bnz_m=nrm(ks[22], (1,)), bnz_v=u(ks[23], (1,), 0.5, 1.5),
    )

    x = jax.random.normal(ks[24], (N, C, D, H, W), jnp.float32)

    out = jax.block_until_ready(esam_pallas(x, p))
    ref = jax.block_until_ready(esam_ref(x, p))

    assert out.shape == (N, 1, D, H, W), out.shape
    max_err = float(jnp.max(jnp.abs(out - ref)))
    assert jnp.allclose(out, ref, rtol=1e-2, atol=1e-2), f"max err {max_err}"
    print("KERNEL_OK")
</pallas_src>

<mosaic_0001>
module attributes {stable_mosaic.version = 11 : i64} {
  func.func @k(%arg0: memref<8x128xf32, #tpu.memory_space<vmem>>, %arg1: memref<8x128xf32, #tpu.memory_space<vmem>>) attributes {dimension_semantics = [], scalar_prefetch = 0 : i64, scratch_operands = 0 : i64, tpu.core_type = #tpu.core_type<tc>} {
    %c0 = arith.constant 0 : index
    %c0_0 = arith.constant 0 : index
    %0 = vector.load %arg0[%c0, %c0_0] : memref<8x128xf32, #tpu.memory_space<vmem>>, vector<8x128xf32>
    %c1_i32 = arith.constant 1 : i32
    %1 = tpu.dynamic_rotate %0 by %c1_i32 dim 1 : vector<8x128xf32>, i32 -> vector<8x128xf32>
    %c0_1 = arith.constant 0 : index
    %c0_2 = arith.constant 0 : index
    %2 = vector.load %arg1[%c0_1, %c0_2] : memref<8x128xf32, #tpu.memory_space<vmem>>, vector<8x128xf32>
    tpu.vector_store %arg1[%c0_1, %c0_2], %1 {strides = array<i32>} : memref<8x128xf32, #tpu.memory_space<vmem>>, vector<8x128xf32>,
    return
  }
}

module attributes {stable_mosaic.version = 11 : i64} {
  func.func @esam_kernel(%arg0: i32, %arg1: memref<1x4x8x256xf32, #tpu.memory_space<vmem>>, %arg2: memref<8x256xf32, #tpu.memory_space<vmem>>, %arg3: memref<108xf32, #tpu.memory_space<smem>>, %arg4: memref<12xf32, #tpu.memory_space<smem>>, %arg5: memref<8xf32, #tpu.memory_space<smem>>, %arg6: memref<1x8x256xf32, #tpu.memory_space<vmem>>, %arg7: memref<8x256xf32, #tpu.memory_space<vmem>>, %arg8: memref<8x256xf32, #tpu.memory_space<vmem>>, %arg9: memref<8x256xf32, #tpu.memory_space<vmem>>) attributes {dimension_semantics = [#tpu.dimension_semantics<parallel>], iteration_bounds = array<i64: 2>, scalar_prefetch = 0 : i64, scratch_operands = 3 : i64, tpu.core_type = #tpu.core_type<tc>, window_params = [{transform_indices = @transform_0, window_bounds = array<i64: 1, 4, 8, 256>}, {pipeline_mode = #tpu.pipeline_mode<synchronous>, transform_indices = @transform_1, window_bounds = array<i64: 8, 256>}, {transform_indices = @transform_2, window_bounds = array<i64: 108>}, {transform_indices = @transform_3, window_bounds = array<i64: 12>}, {transform_indices = @transform_4, window_bounds = array<i64: 8>}, {transform_indices = @transform_5, window_bounds = array<i64: 1, 8, 256>}]} {
    %c0 = arith.constant 0 : index
    %c0_0 = arith.constant 0 : index
    %c0_1 = arith.constant 0 : index
    %c0_2 = arith.constant 0 : index
    %0 = vector.load %arg1[%c0, %c0_0, %c0_1, %c0_2] : memref<1x4x8x256xf32, #tpu.memory_space<vmem>>, vector<1x1x8x256xf32>
    %1 = vector.shape_cast %0 : vector<1x1x8x256xf32> to vector<8x256xf32>
    %c1_i32 = arith.constant 1 : i32
    %c3_i32 = arith.constant 3 : i32
    %2 = arith.addi %c1_i32, %c3_i32 : i32
    %c1_i32_3 = arith.constant 1 : i32
    %3 = scf.for %arg10 = %c1_i32 to %2 step %c1_i32_3 iter_args(%arg11 = %1) -> (vector<8x256xf32>)  : i32 {
      %c0_52 = arith.constant 0 : index
      %140 = arith.index_cast %arg10 : i32 to index
      %c0_53 = arith.constant 0 : index
      %c0_54 = arith.constant 0 : index
      %141 = vector.load %arg1[%c0_52, %140, %c0_53, %c0_54] : memref<1x4x8x256xf32, #tpu.memory_space<vmem>>, vector<1x1x8x256xf32>
      %142 = vector.shape_cast %141 : vector<1x1x8x256xf32> to vector<8x256xf32>
      %143 = arith.addf %arg11, %142 : vector<8x256xf32>
      scf.yield %143 : vector<8x256xf32>
    }
    %c3_i32_4 = arith.constant 3 : i32
    %c3 = arith.constant 3 : index
    %c0_5 = arith.constant 0 : index
    %4 = vector.load %arg2[%c3, %c0_5] : memref<8x256xf32, #tpu.memory_space<vmem>>, vector<1x256xf32>
    %5 = vector.extract_strided_slice %3 {offsets = [0, 255], sizes = [8, 1], strides = [1, 1]} : vector<8x256xf32> to vector<8x1xf32>
    %6 = vector.extract_strided_slice %3 {offsets = [0, 0], sizes = [8, 255], strides = [1, 1]} : vector<8x256xf32> to vector<8x255xf32>
    %7 = tpu.concatenate %5, %6 in 1 : vector<8x1xf32>, vector<8x255xf32> -> vector<8x256xf32>
    %8 = vector.broadcast %4 : vector<1x256xf32> to vector<8x256xf32>
    %9 = arith.mulf %7, %8 : vector<8x256xf32>
    %cst = arith.constant 2.000000e+00 : f32
    %10 = vector.broadcast %cst : f32 to vector<8x256xf32>
    %11 = arith.mulf %10, %3 : vector<8x256xf32>
    %12 = arith.addf %9, %11 : vector<8x256xf32>
    %c4 = arith.constant 4 : index
    %c0_6 = arith.constant 0 : index
    %13 = vector.load %arg2[%c4, %c0_6] : memref<8x256xf32, #tpu.memory_space<vmem>>, vector<1x256xf32>
    %14 = vector.extract_strided_slice %3 {offsets = [0, 1], sizes = [8, 255], strides = [1, 1]} : vector<8x256xf32> to vector<8x255xf32>
    %15 = vector.extract_strided_slice %3 {offsets = [0, 0], sizes = [8, 1], strides = [1, 1]} : vector<8x256xf32> to vector<8x1xf32>
    %16 = tpu.concatenate %14, %15 in 1 : vector<8x255xf32>, vector<8x1xf32> -> vector<8x256xf32>
    %17 = vector.broadcast %13 : vector<1x256xf32> to vector<8x256xf32>
    %18 = arith.mulf %16, %17 : vector<8x256xf32>
    %19 = arith.addf %12, %18 : vector<8x256xf32>
    %c1 = arith.constant 1 : index
    %c0_7 = arith.constant 0 : index
    %20 = vector.load %arg2[%c1, %c0_7] : memref<8x256xf32, #tpu.memory_space<vmem>>, vector<1x256xf32>
    %21 = vector.extract_strided_slice %3 {offsets = [0, 240], sizes = [8, 16], strides = [1, 1]} : vector<8x256xf32> to vector<8x16xf32>
    %22 = vector.extract_strided_slice %3 {offsets = [0, 0], sizes = [8, 240], strides = [1, 1]} : vector<8x256xf32> to vector<8x240xf32>
    %23 = tpu.concatenate %21, %22 in 1 : vector<8x16xf32>, vector<8x240xf32> -> vector<8x256xf32>
    %24 = vector.broadcast %20 : vector<1x256xf32> to vector<8x256xf32>
    %25 = arith.mulf %23, %24 : vector<8x256xf32>
    %cst_8 = arith.constant 2.000000e+00 : f32
    %26 = vector.broadcast %cst_8 : f32 to vector<8x256xf32>
    %27 = arith.mulf %26, %3 : vector<8x256xf32>
    %28 = arith.addf %25, %27 : vector<8x256xf32>
    %c6 = arith.constant 6 : index
    %c0_9 = arith.constant 0 : index
    %29 = vector.load %arg2[%c6, %c0_9] : memref<8x256xf32, #tpu.memory_space<vmem>>, vector<1x256xf32>
    %30 = vector.extract_strided_slice %3 {offsets = [0, 16], sizes = [8, 240], strides = [1, 1]} : vector<8x256xf32> to vector<8x240xf32>
    %31 = vector.extract_strided_slice %3 {offsets = [0, 0], sizes = [8, 16], strides = [1, 1]} : vector<8x256xf32> to vector<8x16xf32>
    %32 = tpu.concatenate %30, %31 in 1 : vector<8x240xf32>, vector<8x16xf32> -> vector<8x256xf32>
    %33 = vector.broadcast %29 : vector<1x256xf32> to vector<8x256xf32>
    %34 = arith.mulf %32, %33 : vector<8x256xf32>
    %35 = arith.addf %28, %34 : vector<8x256xf32>
    %c1_10 = arith.constant 1 : index
    %c0_11 = arith.constant 0 : index
    %36 = vector.load %arg2[%c1_10, %c0_11] : memref<8x256xf32, #tpu.memory_space<vmem>>, vector<1x256xf32>
    %37 = vector.extract_strided_slice %19 {offsets = [0, 240], sizes = [8, 16], strides = [1, 1]} : vector<8x256xf32> to vector<8x16xf32>
    %38 = vector.extract_strided_slice %19 {offsets = [0, 0], sizes = [8, 240], strides = [1, 1]} : vector<8x256xf32> to vector<8x240xf32>
    %39 = tpu.concatenate %37, %38 in 1 : vector<8x16xf32>, vector<8x240xf32> -> vector<8x256xf32>
    %40 = vector.broadcast %36 : vector<1x256xf32> to vector<8x256xf32>
    %41 = arith.mulf %39, %40 : vector<8x256xf32>
    %cst_12 = arith.constant 2.000000e+00 : f32
    %42 = vector.broadcast %cst_12 : f32 to vector<8x256xf32>
    %43 = arith.mulf %42, %19 : vector<8x256xf32>
    %44 = arith.addf %41, %43 : vector<8x256xf32>
    %c6_13 = arith.constant 6 : index
    %c0_14 = arith.constant 0 : index
    %45 = vector.load %arg2[%c6_13, %c0_14] : memref<8x256xf32, #tpu.memory_space<vmem>>, vector<1x256xf32>
    %46 = vector.extract_strided_slice %19 {offsets = [0, 16], sizes = [8, 240], strides = [1, 1]} : vector<8x256xf32> to vector<8x240xf32>
    %47 = vector.extract_strided_slice %19 {offsets = [0, 0], sizes = [8, 16], strides = [1, 1]} : vector<8x256xf32> to vector<8x16xf32>
    %48 = tpu.concatenate %46, %47 in 1 : vector<8x240xf32>, vector<8x16xf32> -> vector<8x256xf32>
    %49 = vector.broadcast %45 : vector<1x256xf32> to vector<8x256xf32>
    %50 = arith.mulf %48, %49 : vector<8x256xf32>
    %51 = arith.addf %44, %50 : vector<8x256xf32>
    %c3_15 = arith.constant 3 : index
    %c0_16 = arith.constant 0 : index
    %52 = vector.load %arg2[%c3_15, %c0_16] : memref<8x256xf32, #tpu.memory_space<vmem>>, vector<1x256xf32>
    %53 = vector.extract_strided_slice %35 {offsets = [0, 255], sizes = [8, 1], strides = [1, 1]} : vector<8x256xf32> to vector<8x1xf32>
    %54 = vector.extract_strided_slice %35 {offsets = [0, 0], sizes = [8, 255], strides = [1, 1]} : vector<8x256xf32> to vector<8x255xf32>
    %55 = tpu.concatenate %53, %54 in 1 : vector<8x1xf32>, vector<8x255xf32> -> vector<8x256xf32>
    %56 = vector.broadcast %52 : vector<1x256xf32> to vector<8x256xf32>
    %57 = arith.mulf %55, %56 : vector<8x256xf32>
    %c4_17 = arith.constant 4 : index
    %c0_18 = arith.constant 0 : index
    %58 = vector.load %arg2[%c4_17, %c0_18] : memref<8x256xf32, #tpu.memory_space<vmem>>, vector<1x256xf32>
    %59 = vector.extract_strided_slice %35 {offsets = [0, 1], sizes = [8, 255], strides = [1, 1]} : vector<8x256xf32> to vector<8x255xf32>
    %60 = vector.extract_strided_slice %35 {offsets = [0, 0], sizes = [8, 1], strides = [1, 1]} : vector<8x256xf32> to vector<8x1xf32>
    %61 = tpu.concatenate %59, %60 in 1 : vector<8x255xf32>, vector<8x1xf32> -> vector<8x256xf32>
    %62 = vector.broadcast %58 : vector<1x256xf32> to vector<8x256xf32>
    %63 = arith.mulf %61, %62 : vector<8x256xf32>
    %64 = arith.subf %57, %63 : vector<8x256xf32>
    %c1_19 = arith.constant 1 : index
    %c0_20 = arith.constant 0 : index
    %65 = vector.load %arg2[%c1_19, %c0_20] : memref<8x256xf32, #tpu.memory_space<vmem>>, vector<1x256xf32>
    %66 = vector.extract_strided_slice %19 {offsets = [0, 240], sizes = [8, 16], strides = [1, 1]} : vector<8x256xf32> to vector<8x16xf32>
    %67 = vector.extract_strided_slice %19 {offsets = [0, 0], sizes = [8, 240], strides = [1, 1]} : vector<8x256xf32> to vector<8x240xf32>
    %68 = tpu.concatenate %66, %67 in 1 : vector<8x16xf32>, vector<8x240xf32> -> vector<8x256xf32>
    %69 = vector.broadcast %65 : vector<1x256xf32> to vector<8x256xf32>
    %70 = arith.mulf %68, %69 : vector<8x256xf32>
    %c6_21 = arith.constant 6 : index
    %c0_22 = arith.constant 0 : index
    %71 = vector.load %arg2[%c6_21, %c0_22] : memref<8x256xf32, #tpu.memory_space<vmem>>, vector<1x256xf32>
    %72 = vector.extract_strided_slice %19 {offsets = [0, 16], sizes = [8, 240], strides = [1, 1]} : vector<8x256xf32> to vector<8x240xf32>
    %73 = vector.extract_strided_slice %19 {offsets = [0, 0], sizes = [8, 16], strides = [1, 1]} : vector<8x256xf32> to vector<8x16xf32>
    %74 = tpu.concatenate %72, %73 in 1 : vector<8x240xf32>, vector<8x16xf32> -> vector<8x256xf32>
    %75 = vector.broadcast %71 : vector<1x256xf32> to vector<8x256xf32>
    %76 = arith.mulf %74, %75 : vector<8x256xf32>
    %77 = arith.subf %70, %76 : vector<8x256xf32>
    %cst_23 = arith.constant 0.000000e+00 : f32
    %78 = vector.broadcast %cst_23 : f32 to vector<1x256xf32>
    %79 = vector.extract_strided_slice %51 {offsets = [0, 0], sizes = [7, 256], strides = [1, 1]} : vector<8x256xf32> to vector<7x256xf32>
    %80 = tpu.concatenate %78, %79 in 0 : vector<1x256xf32>, vector<7x256xf32> -> vector<8x256xf32>
    %81 = vector.extract_strided_slice %51 {offsets = [1, 0], sizes = [7, 256], strides = [1, 1]} : vector<8x256xf32> to vector<7x256xf32>
    %cst_24 = arith.constant 0.000000e+00 : f32
    %82 = vector.broadcast %cst_24 : f32 to vector<1x256xf32>
    %83 = tpu.concatenate %81, %82 in 0 : vector<7x256xf32>, vector<1x256xf32> -> vector<8x256xf32>
    %84 = arith.subf %80, %83 : vector<8x256xf32>
    %c0_25 = arith.constant 0 : index
    %85 = memref.load %arg5[%c0_25] : memref<8xf32, #tpu.memory_space<smem>>
    %86 = vector.broadcast %85 : f32 to vector<8x256xf32>
    %87 = arith.mulf %64, %86 : vector<8x256xf32>
    %c1_26 = arith.constant 1 : index
    %88 = memref.load %arg5[%c1_26] : memref<8xf32, #tpu.memory_space<smem>>
    %89 = vector.broadcast %88 : f32 to vector<8x256xf32>
    %90 = arith.addf %87, %89 : vector<8x256xf32>
    %c2 = arith.constant 2 : index
    %91 = memref.load %arg5[%c2] : memref<8xf32, #tpu.memory_space<smem>>
    %92 = vector.broadcast %91 : f32 to vector<8x256xf32>
    %93 = arith.mulf %77, %92 : vector<8x256xf32>
    %c3_27 = arith.constant 3 : index
    %94 = memref.load %arg5[%c3_27] : memref<8xf32, #tpu.memory_space<smem>>
    %95 = vector.broadcast %94 : f32 to vector<8x256xf32>
    %96 = arith.addf %93, %95 : vector<8x256xf32>
    %c4_28 = arith.constant 4 : index
    %97 = memref.load %arg5[%c4_28] : memref<8xf32, #tpu.memory_space<smem>>
    %98 = vector.broadcast %97 : f32 to vector<8x256xf32>
    %99 = arith.mulf %84, %98 : vector<8x256xf32>
    %c5 = arith.constant 5 : index
    %100 = memref.load %arg5[%c5] : memref<8xf32, #tpu.memory_space<smem>>
    %101 = vector.broadcast %100 : f32 to vector<8x256xf32>
    %102 = arith.addf %99, %101 : vector<8x256xf32>
    %103 = arith.mulf %90, %90 : vector<8x256xf32>
    %104 = arith.mulf %96, %96 : vector<8x256xf32>
    %105 = arith.addf %103, %104 : vector<8x256xf32>
    %106 = arith.mulf %102, %102 : vector<8x256xf32>
    %107 = arith.addf %105, %106 : vector<8x256xf32>
    %108 = math.sqrt %107 : vector<8x256xf32>
    %109 = arith.negf %108 : vector<8x256xf32>
    %110 = math.exp %109 : vector<8x256xf32>
    %cst_29 = arith.constant 1.000000e+00 : f32
    %111 = vector.broadcast %cst_29 : f32 to vector<8x256xf32>
    %112 = arith.addf %111, %110 : vector<8x256xf32>
    %113 = arith.divf %111, %112 : vector<8x256xf32>
    %cst_30 = arith.constant 0.000000e+00 : f32
    %114 = vector.broadcast %cst_30 : f32 to vector<8x256xf32>
    %c0_31 = arith.constant 0 : index
    %c0_32 = arith.constant 0 : index
    %115 = vector.load %arg7[%c0_31, %c0_32] : memref<8x256xf32, #tpu.memory_space<vmem>>, vector<8x256xf32>
    tpu.vector_store %arg7[%c0_31, %c0_32], %114 {strides = array<i32>} : memref<8x256xf32, #tpu.memory_space<vmem>>, vector<8x256xf32>,
    %c0_33 = arith.constant 0 : index
    %c0_34 = arith.constant 0 : index
    %116 = vector.load %arg8[%c0_33, %c0_34] : memref<8x256xf32, #tpu.memory_space<vmem>>, vector<8x256xf32>
    tpu.vector_store %arg8[%c0_33, %c0_34], %114 {strides = array<i32>} : memref<8x256xf32, #tpu.memory_space<vmem>>, vector<8x256xf32>,
    %c0_35 = arith.constant 0 : index
    %c0_36 = arith.constant 0 : index
    %117 = vector.load %arg9[%c0_35, %c0_36] : memref<8x256xf32, #tpu.memory_space<vmem>>, vector<8x256xf32>
    tpu.vector_store %arg9[%c0_35, %c0_36], %114 {strides = array<i32>} : memref<8x256xf32, #tpu.memory_space<vmem>>, vector<8x256xf32>,
    %c0_i32 = arith.constant 0 : i32
    %c4_i32 = arith.constant 4 : i32
    %118 = arith.addi %c0_i32, %c4_i32 : i32
    %c1_i32_37 = arith.constant 1 : i32
    scf.for %arg10 = %c0_i32 to %118 step %c1_i32_37  : i32 {
      %c0_52 = arith.constant 0 : index
      %140 = arith.index_cast %arg10 : i32 to index
      %c0_53 = arith.constant 0 : index
      %c0_54 = arith.constant 0 : index
      %141 = vector.load %arg1[%c0_52, %140, %c0_53, %c0_54] : memref<1x4x8x256xf32, #tpu.memory_space<vmem>>, vector<1x1x8x256xf32>
      %142 = vector.shape_cast %141 : vector<1x1x8x256xf32> to vector<8x256xf32>
      %143 = arith.mulf %113, %142 : vector<8x256xf32>
      %144 = arith.index_cast %arg10 : i32 to index
      %145 = memref.load %arg4[%144] : memref<12xf32, #tpu.memory_space<smem>>
      %146 = vector.broadcast %145 : f32 to vector<8x256xf32>
      %147 = arith.mulf %143, %146 : vector<8x256xf32>
      %c4_i32_55 = arith.constant 4 : i32
      %148 = arith.addi %c4_i32_55, %arg10 : i32
      %149 = arith.index_cast %148 : i32 to index
      %150 = memref.load %arg4[%149] : memref<12xf32, #tpu.memory_space<smem>>
      %151 = vector.broadcast %150 : f32 to vector<8x256xf32>
      %152 = arith.addf %147, %151 : vector<8x256xf32>
      %cst_56 = arith.constant 0.000000e+00 : f32
      %153 = vector.broadcast %cst_56 : f32 to vector<8x256xf32>
      %154 = arith.maximumf %152, %153 : vector<8x256xf32>
      %c8_i32 = arith.constant 8 : i32
      %155 = arith.addi %c8_i32, %arg10 : i32
      %156 = arith.index_cast %155 : i32 to index
      %157 = memref.load %arg4[%156] : memref<12xf32, #tpu.memory_space<smem>>
      %158 = vector.broadcast %157 : f32 to vector<8x256xf32>
      %159 = arith.mulf %158, %142 : vector<8x256xf32>
      %c0_57 = arith.constant 0 : index
      %c0_58 = arith.constant 0 : index
      %160 = vector.load %arg2[%c0_57, %c0_58] : memref<8x256xf32, #tpu.memory_space<vmem>>, vector<1x256xf32>
      %161 = vector.extract_strided_slice %154 {offsets = [0, 239], sizes = [8, 17], strides = [1, 1]} : vector<8x256xf32> to vector<8x17xf32>
      %162 = vector.extract_strided_slice %154 {offsets = [0, 0], sizes = [8, 239], strides = [1, 1]} : vector<8x256xf32> to vector<8x239xf32>
      %163 = tpu.concatenate %161, %162 in 1 : vector<8x17xf32>, vector<8x239xf32> -> vector<8x256xf32>
      %164 = vector.broadcast %160 : vector<1x256xf32> to vector<8x256xf32>
      %165 = arith.mulf %163, %164 : vector<8x256xf32>
      %c27_i32 = arith.constant 27 : i32
      %166 = arith.muli %arg10, %c27_i32 : i32
      %c0_i32_59 = arith.constant 0 : i32
      %167 = arith.addi %166, %c0_i32_59 : i32
      %c0_i32_60 = arith.constant 0 : i32
      %168 = arith.addi %167, %c0_i32_60 : i32
      %169 = arith.index_cast %168 : i32 to index
      %170 = memref.load %arg3[%169] : memref<108xf32, #tpu.memory_space<smem>>
      %171 = vector.broadcast %170 : f32 to vector<8x256xf32>
      %172 = arith.mulf %171, %165 : vector<8x256xf32>
      %173 = arith.addf %114, %172 : vector<8x256xf32>
      %c9_i32 = arith.constant 9 : i32
      %174 = arith.addi %168, %c9_i32 : i32
      %175 = arith.index_cast %174 : i32 to index
      %176 = memref.load %arg3[%175] : memref<108xf32, #tpu.memory_space<smem>>
      %177 = vector.broadcast %176 : f32 to vector<8x256xf32>
      %178 = arith.mulf %177, %165 : vector<8x256xf32>
      %179 = arith.addf %159, %178 : vector<8x256xf32>
      %c18_i32 = arith.constant 18 : i32
      %180 = arith.addi %168, %c18_i32 : i32
      %181 = arith.index_cast %180 : i32 to index
      %182 = memref.load %arg3[%181] : memref<108xf32, #tpu.memory_space<smem>>
      %183 = vector.broadcast %182 : f32 to vector<8x256xf32>
      %184 = arith.mulf %183, %165 : vector<8x256xf32>
      %185 = arith.addf %114, %184 : vector<8x256xf32>
      %c1_61 = arith.constant 1 : index
      %c0_62 = arith.constant 0 : index
      %186 = vector.load %arg2[%c1_61, %c0_62] : memref<8x256xf32, #tpu.memory_space<vmem>>, vector<1x256xf32>
      %187 = vector.extract_strided_slice %154 {offsets = [0, 240], sizes = [8, 16], strides = [1, 1]} : vector<8x256xf32> to vector<8x16xf32>
      %188 = vector.extract_strided_slice %154 {offsets = [0, 0], sizes = [8, 240], strides = [1, 1]} : vector<8x256xf32> to vector<8x240xf32>
      %189 = tpu.concatenate %187, %188 in 1 : vector<8x16xf32>, vector<8x240xf32> -> vector<8x256xf32>
      %190 = vector.broadcast %186 : vector<1x256xf32> to vector<8x256xf32>
      %191 = arith.mulf %189, %190 : vector<8x256xf32>
      %c27_i32_63 = arith.constant 27 : i32
      %192 = arith.muli %arg10, %c27_i32_63 : i32
      %c0_i32_64 = arith.constant 0 : i32
      %193 = arith.addi %192, %c0_i32_64 : i32
      %c1_i32_65 = arith.constant 1 : i32
      %194 = arith.addi %193, %c1_i32_65 : i32
      %195 = arith.index_cast %194 : i32 to index
      %196 = memref.load %arg3[%195] : memref<108xf32, #tpu.memory_space<smem>>
      %197 = vector.broadcast %196 : f32 to vector<8x256xf32>
      %198 = arith.mulf %197, %191 : vector<8x256xf32>
      %199 = arith.addf %173, %198 : vector<8x256xf32>
      %c9_i32_66 = arith.constant 9 : i32
      %200 = arith.addi %194, %c9_i32_66 : i32
      %201 = arith.index_cast %200 : i32 to index
      %202 = memref.load %arg3[%201] : memref<108xf32, #tpu.memory_space<smem>>
      %203 = vector.broadcast %202 : f32 to vector<8x256xf32>
      %204 = arith.mulf %203, %191 : vector<8x256xf32>
      %205 = arith.addf %179, %204 : vector<8x256xf32>
      %c18_i32_67 = arith.constant 18 : i32
      %206 = arith.addi %194, %c18_i32_67 : i32
      %207 = arith.index_cast %206 : i32 to index
      %208 = memref.load %arg3[%207] : memref<108xf32, #tpu.memory_space<smem>>
      %209 = vector.broadcast %208 : f32 to vector<8x256xf32>
      %210 = arith.mulf %209, %191 : vector<8x256xf32>
      %211 = arith.addf %185, %210 : vector<8x256xf32>
      %c2_68 = arith.constant 2 : index
      %c0_69 = arith.constant 0 : index
      %212 = vector.load %arg2[%c2_68, %c0_69] : memref<8x256xf32, #tpu.memory_space<vmem>>, vector<1x256xf32>
      %213 = vector.extract_strided_slice %154 {offsets = [0, 241], sizes = [8, 15], strides = [1, 1]} : vector<8x256xf32> to vector<8x15xf32>
      %214 = vector.extract_strided_slice %154 {offsets = [0, 0], sizes = [8, 241], strides = [1, 1]} : vector<8x256xf32> to vector<8x241xf32>
      %215 = tpu.concatenate %213, %214 in 1 : vector<8x15xf32>, vector<8x241xf32> -> vector<8x256xf32>
      %216 = vector.broadcast %212 : vector<1x256xf32> to vector<8x256xf32>
      %217 = arith.mulf %215, %216 : vector<8x256xf32>
      %c27_i32_70 = arith.constant 27 : i32
      %218 = arith.muli %arg10, %c27_i32_70 : i32
      %c0_i32_71 = arith.constant 0 : i32
      %219 = arith.addi %218, %c0_i32_71 : i32
      %c2_i32 = arith.constant 2 : i32
      %220 = arith.addi %219, %c2_i32 : i32
      %221 = arith.index_cast %220 : i32 to index
      %222 = memref.load %arg3[%221] : memref<108xf32, #tpu.memory_space<smem>>
      %223 = vector.broadcast %222 : f32 to vector<8x256xf32>
      %224 = arith.mulf %223, %217 : vector<8x256xf32>
      %225 = arith.addf %199, %224 : vector<8x256xf32>
      %c9_i32_72 = arith.constant 9 : i32
      %226 = arith.addi %220, %c9_i32_72 : i32
      %227 = arith.index_cast %226 : i32 to index
      %228 = memref.load %arg3[%227] : memref<108xf32, #tpu.memory_space<smem>>
      %229 = vector.broadcast %228 : f32 to vector<8x256xf32>
      %230 = arith.mulf %229, %217 : vector<8x256xf32>
      %231 = arith.addf %205, %230 : vector<8x256xf32>
      %c18_i32_73 = arith.constant 18 : i32
      %232 = arith.addi %220, %c18_i32_73 : i32
      %233 = arith.index_cast %232 : i32 to index
      %234 = memref.load %arg3[%233] : memref<108xf32, #tpu.memory_space<smem>>
      %235 = vector.broadcast %234 : f32 to vector<8x256xf32>
      %236 = arith.mulf %235, %217 : vector<8x256xf32>
      %237 = arith.addf %211, %236 : vector<8x256xf32>
      %c3_74 = arith.constant 3 : index
      %c0_75 = arith.constant 0 : index
      %238 = vector.load %arg2[%c3_74, %c0_75] : memref<8x256xf32, #tpu.memory_space<vmem>>, vector<1x256xf32>
      %239 = vector.extract_strided_slice %154 {offsets = [0, 255], sizes = [8, 1], strides = [1, 1]} : vector<8x256xf32> to vector<8x1xf32>
      %240 = vector.extract_strided_slice %154 {offsets = [0, 0], sizes = [8, 255], strides = [1, 1]} : vector<8x256xf32> to vector<8x255xf32>
      %241 = tpu.concatenate %239, %240 in 1 : vector<8x1xf32>, vector<8x255xf32> -> vector<8x256xf32>
      %242 = vector.broadcast %238 : vector<1x256xf32> to vector<8x256xf32>
      %243 = arith.mulf %241, %242 : vector<8x256xf32>
      %c27_i32_76 = arith.constant 27 : i32
      %244 = arith.muli %arg10, %c27_i32_76 : i32
      %c3_i32_77 = arith.constant 3 : i32
      %245 = arith.addi %244, %c3_i32_77 : i32
      %c0_i32_78 = arith.constant 0 : i32
      %246 = arith.addi %245, %c0_i32_78 : i32
      %247 = arith.index_cast %246 : i32 to index
      %248 = memref.load %arg3[%247] : memref<108xf32, #tpu.memory_space<smem>>
      %249 = vector.broadcast %248 : f32 to vector<8x256xf32>
      %250 = arith.mulf %249, %243 : vector<8x256xf32>
      %251 = arith.addf %225, %250 : vector<8x256xf32>
      %c9_i32_79 = arith.constant 9 : i32
      %252 = arith.addi %246, %c9_i32_79 : i32
      %253 = arith.index_cast %252 : i32 to index
      %254 = memref.load %arg3[%253] : memref<108xf32, #tpu.memory_space<smem>>
      %255 = vector.broadcast %254 : f32 to vector<8x256xf32>
      %256 = arith.mulf %255, %243 : vector<8x256xf32>
      %257 = arith.addf %231, %256 : vector<8x256xf32>
      %c18_i32_80 = arith.constant 18 : i32
      %258 = arith.addi %246, %c18_i32_80 : i32
      %259 = arith.index_cast %258 : i32 to index
      %260 = memref.load %arg3[%259] : memref<108xf32, #tpu.memory_space<smem>>
      %261 = vector.broadcast %260 : f32 to vector<8x256xf32>
      %262 = arith.mulf %261, %243 : vector<8x256xf32>
      %263 = arith.addf %237, %262 : vector<8x256xf32>
      %c27_i32_81 = arith.constant 27 : i32
      %264 = arith.muli %arg10, %c27_i32_81 : i32
      %c3_i32_82 = arith.constant 3 : i32
      %265 = arith.addi %264, %c3_i32_82 : i32
      %c1_i32_83 = arith.constant 1 : i32
      %266 = arith.addi %265, %c1_i32_83 : i32
      %267 = arith.index_cast %266 : i32 to index
      %268 = memref.load %arg3[%267] : memref<108xf32, #tpu.memory_space<smem>>
      %269 = vector.broadcast %268 : f32 to vector<8x256xf32>
      %270 = arith.mulf %269, %154 : vector<8x256xf32>
      %271 = arith.addf %251, %270 : vector<8x256xf32>
      %c9_i32_84 = arith.constant 9 : i32
      %272 = arith.addi %266, %c9_i32_84 : i32
      %273 = arith.index_cast %272 : i32 to index
      %274 = memref.load %arg3[%273] : memref<108xf32, #tpu.memory_space<smem>>
      %275 = vector.broadcast %274 : f32 to vector<8x256xf32>
      %276 = arith.mulf %275, %154 : vector<8x256xf32>
      %277 = arith.addf %257, %276 : vector<8x256xf32>
      %c18_i32_85 = arith.constant 18 : i32
      %278 = arith.addi %266, %c18_i32_85 : i32
      %279 = arith.index_cast %278 : i32 to index
      %280 = memref.load %arg3[%279] : memref<108xf32, #tpu.memory_space<smem>>
      %281 = vector.broadcast %280 : f32 to vector<8x256xf32>
      %282 = arith.mulf %281, %154 : vector<8x256xf32>
      %283 = arith.addf %263, %282 : vector<8x256xf32>
      %c4_86 = arith.constant 4 : index
      %c0_87 = arith.constant 0 : index
      %284 = vector.load %arg2[%c4_86, %c0_87] : memref<8x256xf32, #tpu.memory_space<vmem>>, vector<1x256xf32>
      %285 = vector.extract_strided_slice %154 {offsets = [0, 1], sizes = [8, 255], strides = [1, 1]} : vector<8x256xf32> to vector<8x255xf32>
      %286 = vector.extract_strided_slice %154 {offsets = [0, 0], sizes = [8, 1], strides = [1, 1]} : vector<8x256xf32> to vector<8x1xf32>
      %287 = tpu.concatenate %285, %286 in 1 : vector<8x255xf32>, vector<8x1xf32> -> vector<8x256xf32>
      %288 = vector.broadcast %284 : vector<1x256xf32> to vector<8x256xf32>
      %289 = arith.mulf %287, %288 : vector<8x256xf32>
      %c27_i32_88 = arith.constant 27 : i32
      %290 = arith.muli %arg10, %c27_i32_88 : i32
      %c3_i32_89 = arith.constant 3 : i32
      %291 = arith.addi %290, %c3_i32_89 : i32
      %c2_i32_90 = arith.constant 2 : i32
      %292 = arith.addi %291, %c2_i32_90 : i32
      %293 = arith.index_cast %292 : i32 to index
      %294 = memref.load %arg3[%293] : memref<108xf32, #tpu.memory_space<smem>>
      %295 = vector.broadcast %294 : f32 to vector<8x256xf32>
      %296 = arith.mulf %295, %289 : vector<8x256xf32>
      %297 = arith.addf %271, %296 : vector<8x256xf32>
      %c9_i32_91 = arith.constant 9 : i32
      %298 = arith.addi %292, %c9_i32_91 : i32
      %299 = arith.index_cast %298 : i32 to index
      %300 = memref.load %arg3[%299] : memref<108xf32, #tpu.memory_space<smem>>
      %301 = vector.broadcast %300 : f32 to vector<8x256xf32>
      %302 = arith.mulf %301, %289 : vector<8x256xf32>
      %303 = arith.addf %277, %302 : vector<8x256xf32>
      %c18_i32_92 = arith.constant 18 : i32
      %304 = arith.addi %292, %c18_i32_92 : i32
      %305 = arith.index_cast %304 : i32 to index
      %306 = memref.load %arg3[%305] : memref<108xf32, #tpu.memory_space<smem>>
      %307 = vector.broadcast %306 : f32 to vector<8x256xf32>
      %308 = arith.mulf %307, %289 : vector<8x256xf32>
      %309 = arith.addf %283, %308 : vector<8x256xf32>
      %c5_93 = arith.constant 5 : index
      %c0_94 = arith.constant 0 : index
      %310 = vector.load %arg2[%c5_93, %c0_94] : memref<8x256xf32, #tpu.memory_space<vmem>>, vector<1x256xf32>
      %311 = vector.extract_strided_slice %154 {offsets = [0, 15], sizes = [8, 241], strides = [1, 1]} : vector<8x256xf32> to vector<8x241xf32>
      %312 = vector.extract_strided_slice %154 {offsets = [0, 0], sizes = [8, 15], strides = [1, 1]} : vector<8x256xf32> to vector<8x15xf32>
      %313 = tpu.concatenate %311, %312 in 1 : vector<8x241xf32>, vector<8x15xf32> -> vector<8x256xf32>
      %314 = vector.broadcast %310 : vector<1x256xf32> to vector<8x256xf32>
      %315 = arith.mulf %313, %314 : vector<8x256xf32>
      %c27_i32_95 = arith.constant 27 : i32
      %316 = arith.muli %arg10, %c27_i32_95 : i32
      %c6_i32 = arith.constant 6 : i32
      %317 = arith.addi %316, %c6_i32 : i32
      %c0_i32_96 = arith.constant 0 : i32
      %318 = arith.addi %317, %c0_i32_96 : i32
      %319 = arith.index_cast %318 : i32 to index
      %320 = memref.load %arg3[%319] : memref<108xf32, #tpu.memory_space<smem>>
      %321 = vector.broadcast %320 : f32 to vector<8x256xf32>
      %322 = arith.mulf %321, %315 : vector<8x256xf32>
      %323 = arith.addf %297, %322 : vector<8x256xf32>
      %c9_i32_97 = arith.constant 9 : i32
      %324 = arith.addi %318, %c9_i32_97 : i32
      %325 = arith.index_cast %324 : i32 to index
      %326 = memref.load %arg3[%325] : memref<108xf32, #tpu.memory_space<smem>>
      %327 = vector.broadcast %326 : f32 to vector<8x256xf32>
      %328 = arith.mulf %327, %315 : vector<8x256xf32>
      %329 = arith.addf %303, %328 : vector<8x256xf32>
      %c18_i32_98 = arith.constant 18 : i32
      %330 = arith.addi %318, %c18_i32_98 : i32
      %331 = arith.index_cast %330 : i32 to index
      %332 = memref.load %arg3[%331] : memref<108xf32, #tpu.memory_space<smem>>
      %333 = vector.broadcast %332 : f32 to vector<8x256xf32>
      %334 = arith.mulf %333, %315 : vector<8x256xf32>
      %335 = arith.addf %309, %334 : vector<8x256xf32>
      %c6_99 = arith.constant 6 : index
      %c0_100 = arith.constant 0 : index
      %336 = vector.load %arg2[%c6_99, %c0_100] : memref<8x256xf32, #tpu.memory_space<vmem>>, vector<1x256xf32>
      %337 = vector.extract_strided_slice %154 {offsets = [0, 16], sizes = [8, 240], strides = [1, 1]} : vector<8x256xf32> to vector<8x240xf32>
      %338 = vector.extract_strided_slice %154 {offsets = [0, 0], sizes = [8, 16], strides = [1, 1]} : vector<8x256xf32> to vector<8x16xf32>
      %339 = tpu.concatenate %337, %338 in 1 : vector<8x240xf32>, vector<8x16xf32> -> vector<8x256xf32>
      %340 = vector.broadcast %336 : vector<1x256xf32> to vector<8x256xf32>
      %341 = arith.mulf %339, %340 : vector<8x256xf32>
      %c27_i32_101 = arith.constant 27 : i32
      %342 = arith.muli %arg10, %c27_i32_101 : i32
      %c6_i32_102 = arith.constant 6 : i32
      %343 = arith.addi %342, %c6_i32_102 : i32
      %c1_i32_103 = arith.constant 1 : i32
      %344 = arith.addi %343, %c1_i32_103 : i32
      %345 = arith.index_cast %344 : i32 to index
      %346 = memref.load %arg3[%345] : memref<108xf32, #tpu.memory_space<smem>>
      %347 = vector.broadcast %346 : f32 to vector<8x256xf32>
      %348 = arith.mulf %347, %341 : vector<8x256xf32>
      %349 = arith.addf %323, %348 : vector<8x256xf32>
      %c9_i32_104 = arith.constant 9 : i32
      %350 = arith.addi %344, %c9_i32_104 : i32
      %351 = arith.index_cast %350 : i32 to index
      %352 = memref.load %arg3[%351] : memref<108xf32, #tpu.memory_space<smem>>
      %353 = vector.broadcast %352 : f32 to vector<8x256xf32>
      %354 = arith.mulf %353, %341 : vector<8x256xf32>
      %355 = arith.addf %329, %354 : vector<8x256xf32>
      %c18_i32_105 = arith.constant 18 : i32
      %356 = arith.addi %344, %c18_i32_105 : i32
      %357 = arith.index_cast %356 : i32 to index
      %358 = memref.load %arg3[%357] : memref<108xf32, #tpu.memory_space<smem>>
      %359 = vector.broadcast %358 : f32 to vector<8x256xf32>
      %360 = arith.mulf %359, %341 : vector<8x256xf32>
      %361 = arith.addf %335, %360 : vector<8x256xf32>
      %c7_106 = arith.constant 7 : index
      %c0_107 = arith.constant 0 : index
      %362 = vector.load %arg2[%c7_106, %c0_107] : memref<8x256xf32, #tpu.memory_space<vmem>>, vector<1x256xf32>
      %363 = vector.extract_strided_slice %154 {offsets = [0, 17], sizes = [8, 239], strides = [1, 1]} : vector<8x256xf32> to vector<8x239xf32>
      %364 = vector.extract_strided_slice %154 {offsets = [0, 0], sizes = [8, 17], strides = [1, 1]} : vector<8x256xf32> to vector<8x17xf32>
      %365 = tpu.concatenate %363, %364 in 1 : vector<8x239xf32>, vector<8x17xf32> -> vector<8x256xf32>
      %366 = vector.broadcast %362 : vector<1x256xf32> to vector<8x256xf32>
      %367 = arith.mulf %365, %366 : vector<8x256xf32>
      %c27_i32_108 = arith.constant 27 : i32
      %368 = arith.muli %arg10, %c27_i32_108 : i32
      %c6_i32_109 = arith.constant 6 : i32
      %369 = arith.addi %368, %c6_i32_109 : i32
      %c2_i32_110 = arith.constant 2 : i32
      %370 = arith.addi %369, %c2_i32_110 : i32
      %371 = arith.index_cast %370 : i32 to index
      %372 = memref.load %arg3[%371] : memref<108xf32, #tpu.memory_space<smem>>
      %373 = vector.broadcast %372 : f32 to vector<8x256xf32>
      %374 = arith.mulf %373, %367 : vector<8x256xf32>
      %375 = arith.addf %349, %374 : vector<8x256xf32>
      %c9_i32_111 = arith.constant 9 : i32
      %376 = arith.addi %370, %c9_i32_111 : i32
      %377 = arith.index_cast %376 : i32 to index
      %378 = memref.load %arg3[%377] : memref<108xf32, #tpu.memory_space<smem>>
      %379 = vector.broadcast %378 : f32 to vector<8x256xf32>
      %380 = arith.mulf %379, %367 : vector<8x256xf32>
      %381 = arith.addf %355, %380 : vector<8x256xf32>
      %c18_i32_112 = arith.constant 18 : i32
      %382 = arith.addi %370, %c18_i32_112 : i32
      %383 = arith.index_cast %382 : i32 to index
      %384 = memref.load %arg3[%383] : memref<108xf32, #tpu.memory_space<smem>>
      %385 = vector.broadcast %384 : f32 to vector<8x256xf32>
      %386 = arith.mulf %385, %367 : vector<8x256xf32>
      %387 = arith.addf %361, %386 : vector<8x256xf32>
      %c0_113 = arith.constant 0 : index
      %c0_114 = arith.constant 0 : index
      %388 = vector.load %arg7[%c0_113, %c0_114] : memref<8x256xf32, #tpu.memory_space<vmem>>, vector<8x256xf32>
      %389 = arith.addf %388, %375 : vector<8x256xf32>
      %c0_115 = arith.constant 0 : index
      %c0_116 = arith.constant 0 : index
      %390 = vector.load %arg7[%c0_115, %c0_116] : memref<8x256xf32, #tpu.memory_space<vmem>>, vector<8x256xf32>
      tpu.vector_store %arg7[%c0_115, %c0_116], %389 {strides = array<i32>} : memref<8x256xf32, #tpu.memory_space<vmem>>, vector<8x256xf32>,
      %c0_117 = arith.constant 0 : index
      %c0_118 = arith.constant 0 : index
      %391 = vector.load %arg8[%c0_117, %c0_118] : memref<8x256xf32, #tpu.memory_space<vmem>>, vector<8x256xf32>
      %392 = arith.addf %391, %381 : vector<8x256xf32>
      %c0_119 = arith.constant 0 : index
      %c0_120 = arith.constant 0 : index
      %393 = vector.load %arg8[%c0_119, %c0_120] : memref<8x256xf32, #tpu.memory_space<vmem>>, vector<8x256xf32>
      tpu.vector_store %arg8[%c0_119, %c0_120], %392 {strides = array<i32>} : memref<8x256xf32, #tpu.memory_space<vmem>>, vector<8x256xf32>,
      %c0_121 = arith.constant 0 : index
      %c0_122 = arith.constant 0 : index
      %394 = vector.load %arg9[%c0_121, %c0_122] : memref<8x256xf32, #tpu.memory_space<vmem>>, vector<8x256xf32>
      %395 = arith.addf %394, %387 : vector<8x256xf32>
      %c0_123 = arith.constant 0 : index
      %c0_124 = arith.constant 0 : index
      %396 = vector.load %arg9[%c0_123, %c0_124] : memref<8x256xf32, #tpu.memory_space<vmem>>, vector<8x256xf32>
      tpu.vector_store %arg9[%c0_123, %c0_124], %395 {strides = array<i32>} : memref<8x256xf32, #tpu.memory_space<vmem>>, vector<8x256xf32>,
    }
    %c4_i32_38 = arith.constant 4 : i32
    %c0_39 = arith.constant 0 : index
    %c0_40 = arith.constant 0 : index
    %119 = vector.load %arg7[%c0_39, %c0_40] : memref<8x256xf32, #tpu.memory_space<vmem>>, vector<8x256xf32>
    %cst_41 = arith.constant 0.000000e+00 : f32
    %120 = vector.broadcast %cst_41 : f32 to vector<1x256xf32>
    %121 = vector.extract_strided_slice %119 {offsets = [0, 0], sizes = [7, 256], strides = [1, 1]} : vector<8x256xf32> to vector<7x256xf32>
    %122 = tpu.concatenate %120, %121 in 0 : vector<1x256xf32>, vector<7x256xf32> -> vector<8x256xf32>
    %c0_42 = arith.constant 0 : index
    %c0_43 = arith.constant 0 : index
    %123 = vector.load %arg8[%c0_42, %c0_43] : memref<8x256xf32, #tpu.memory_space<vmem>>, vector<8x256xf32>
    %124 = arith.addf %122, %123 : vector<8x256xf32>
    %c0_44 = arith.constant 0 : index
    %c0_45 = arith.constant 0 : index
    %125 = vector.load %arg9[%c0_44, %c0_45] : memref<8x256xf32, #tpu.memory_space<vmem>>, vector<8x256xf32>
    %126 = vector.extract_strided_slice %125 {offsets = [1, 0], sizes = [7, 256], strides = [1, 1]} : vector<8x256xf32> to vector<7x256xf32>
    %cst_46 = arith.constant 0.000000e+00 : f32
    %127 = vector.broadcast %cst_46 : f32 to vector<1x256xf32>
    %128 = tpu.concatenate %126, %127 in 0 : vector<7x256xf32>, vector<1x256xf32> -> vector<8x256xf32>
    %129 = arith.addf %124, %128 : vector<8x256xf32>
    %c6_47 = arith.constant 6 : index
    %130 = memref.load %arg5[%c6_47] : memref<8xf32, #tpu.memory_space<smem>>
    %131 = vector.broadcast %130 : f32 to vector<8x256xf32>
    %132 = arith.mulf %129, %131 : vector<8x256xf32>
    %c7 = arith.constant 7 : index
    %133 = memref.load %arg5[%c7] : memref<8xf32, #tpu.memory_space<smem>>
    %134 = vector.broadcast %133 : f32 to vector<8x256xf32>
    %135 = arith.addf %132, %134 : vector<8x256xf32>
    %cst_48 = arith.constant 0.000000e+00 : f32
    %136 = vector.broadcast %cst_48 : f32 to vector<8x256xf32>
    %137 = arith.maximumf %135, %136 : vector<8x256xf32>
    %138 = vector.shape_cast %137 : vector<8x256xf32> to vector<1x8x256xf32>
    %c0_49 = arith.constant 0 : index
    %c0_50 = arith.constant 0 : index
    %c0_51 = arith.constant 0 : index
    %139 = vector.load %arg6[%c0_49, %c0_50, %c0_51] : memref<1x8x256xf32, #tpu.memory_space<vmem>>, vector<1x8x256xf32>
    tpu.vector_store %arg6[%c0_49, %c0_50, %c0_51], %138 {strides = array<i32>} : memref<1x8x256xf32, #tpu.memory_space<vmem>>, vector<1x8x256xf32>,
    return
  }
  func.func @transform_0(%arg0: i32) -> (i32, i32, i32, i32) {
    %c0_i32 = arith.constant 0 : i32
    %c0_i32_0 = arith.constant 0 : i32
    %c0_i32_1 = arith.constant 0 : i32
    %c0_i32_2 = arith.constant 0 : i32
    return %arg0, %c0_i32, %c0_i32_0, %c0_i32_1 : i32, i32, i32, i32
  }
  func.func @transform_1(%arg0: i32) -> (i32, i32) {
    %c0_i32 = arith.constant 0 : i32
    %c0_i32_0 = arith.constant 0 : i32
    %c0_i32_1 = arith.constant 0 : i32
    return %c0_i32, %c0_i32_0 : i32, i32
  }
  func.func @transform_2(%arg0: i32) -> i32 {
    %c0_i32 = arith.constant 0 : i32
    %c0_i32_0 = arith.constant 0 : i32
    return %c0_i32 : i32
  }
  func.func @transform_3(%arg0: i32) -> i32 {
    %c0_i32 = arith.constant 0 : i32
    %c0_i32_0 = arith.constant 0 : i32
    return %c0_i32 : i32
  }
  func.func @transform_4(%arg0: i32) -> i32 {
    %c0_i32 = arith.constant 0 : i32
    %c0_i32_0 = arith.constant 0 : i32
    return %c0_i32 : i32
  }
  func.func @transform_5(%arg0: i32) -> (i32, i32, i32) {
    %c0_i32 = arith.constant 0 : i32
    %c0_i32_0 = arith.constant 0 : i32
    %c0_i32_1 = arith.constant 0 : i32
    return %arg0, %c0_i32, %c0_i32_0 : i32, i32, i32
  }
}

</mosaic_0001>

<llo_original>
// kernel: tpu_custom_call.1
$region0: #{tpu_custom_call.1}
  #allocation0 [shape = 'u32[]', space=smem, size = 0x4, offset = 0x4, fixed_abs, tag = 'smem constant byte address 0x4 - core index']
  #allocation1 [shape = 'u32[144,128]{1,0:T(1,128)}', space=vmem, size = 0x12000, scoped, tag = 'internal scratch']
  %s0 = inlined_call_operand.hbm [shape: f32[8,128], index: 0, kind: input, shape index: {}]
  %s1 = inlined_call_operand.hbm [shape: f32[8,128], index: 1, kind: output, shape index: {}]
  %s2 = sld [smem:[#allocation0]]
  $region18: #{tpu_custom_call.1} parent=0
    _
  %s4 = ssub.s32 1, %s2
  %s5 = scalar_select 0, %s4, %s2
  $region1: #{tpu_custom_call.1} parent=0
    #allocation2 [shape = 'u8[4096]{0}', space=vmem, size = 0x1000, scoped, tag = 'input window, operand 0, single buffered']
    #allocation3 [shape = 's32[1]{0}', space=sflag, size = 0x4, scoped, tag = 'scoped memory for tpu_custom_call.1']
    #allocation4 [shape = 's32[1]{0}', space=sflag, size = 0x4, scoped, tag = 'scoped memory for tpu_custom_call.1']
    #allocation5 [shape = 'u8[4096]{0}', space=vmem, size = 0x1000, scoped, tag = 'output window, operand 0, single buffered']
    %6 = vsyncpa [#allocation3], 0
    %7 = vsyncpa [#allocation4], 0
    // Predicated region
    $region2: #{tpu_custom_call.1} parent=1 // pred_check
      _
    $region3: #{tpu_custom_call.1} parent=1 // pred_check_branch
      %9 = sbr.rel (0) target = $region5
    $region4: #{tpu_custom_call.1} parent=1 // pred_region
      %s11 = ssub.s32 128, 128
      %12 = vsyncadd [#allocation3], %s11
      %s14 = sshll.u32 [#allocation2], 4
      %s15 = int_to_ptr.vmem [resolvable:$true] %s14
      %17 = dma.hbm_to_vmem [thread:$0]  %s0, 128, %s15, [#allocation3]
    $region5: #{tpu_custom_call.1} parent=1 // pred_fallthru
      _
    // Predicated region
    $region6: #{tpu_custom_call.1} parent=1 // pred_check
      _
    $region7: #{tpu_custom_call.1} parent=1 // pred_check_branch
      %19 = sbr.rel (0) target = $region9
    $region8: #{tpu_custom_call.1} parent=1 // pred_region
      %20 = dma.done [#allocation3], 128
    $region9: #{tpu_custom_call.1} parent=1 // pred_fallthru
      _
    %v21 = vld [vmem:[#allocation2] sm:$0xff]
    %22 = vrot.lane.b32.xlu0 %v21, 1
    %v23 = vpop.permute.xlu0 %22
    %24 = vst [vmem:[#allocation5] sm:$0xff] %v23
    // Predicated region
    $region10: #{tpu_custom_call.1} parent=1 // pred_check
      _
    $region11: #{tpu_custom_call.1} parent=1 // pred_check_branch
      %26 = sbr.rel (0) target = $region13
    $region12: #{tpu_custom_call.1} parent=1 // pred_region
      %s28 = ssub.s32 128, 128
      %29 = vsyncadd [#allocation4], %s28
      %s31 = sshll.u32 [#allocation5], 4
      %s32 = int_to_ptr.vmem [resolvable:$true] %s31
      %34 = dma.vmem_to_hbm [thread:$0]  %s32, 128, %s1, [#allocation4]
    $region13: #{tpu_custom_call.1} parent=1 // pred_fallthru
      _
    // Predicated region
    $region14: #{tpu_custom_call.1} parent=1 // pred_check
      _
    $region15: #{tpu_custom_call.1} parent=1 // pred_check_branch
      %36 = sbr.rel (0) target = $region17
    $region16: #{tpu_custom_call.1} parent=1 // pred_region
      %37 = dma.done [#allocation4], 128
    $region17: #{tpu_custom_call.1} parent=1 // pred_fallthru
      _
    %38 = vsyncpa [#allocation3], 1
    %39 = vsyncpa [#allocation4], 1

// kernel: tpu_custom_call.1
$region0: #{tpu_custom_call.1}
  #allocation0 [shape = 'u32[]', space=smem, size = 0x4, offset = 0x4, fixed_abs, tag = 'smem constant byte address 0x4 - core index']
  #allocation1 [shape = 'u32[144,128]{1,0:T(1,128)}', space=vmem, size = 0x12000, scoped, tag = 'internal scratch']
  #allocation2 [shape = 'f32[8,256]{1,0:T(8,128)}', space=vmem, size = 0x2000, scoped, tag = 'scratch operand']
  #allocation3 [shape = 'f32[8,256]{1,0:T(8,128)}', space=vmem, size = 0x2000, scoped, tag = 'scratch operand']
  #allocation4 [shape = 'f32[8,256]{1,0:T(8,128)}', space=vmem, size = 0x2000, scoped, tag = 'scratch operand']
  %s0 = inlined_call_operand.hbm [shape: f32[2,4,8,256], index: 0, kind: input, shape index: {}]
  %s1 = inlined_call_operand.hbm [shape: f32[8,256], index: 1, kind: input, shape index: {}]
  %s2 = inlined_call_operand.vmem [shape: f32[108], index: 2, kind: input, shape index: {}]
  %s3 = inlined_call_operand.vmem [shape: f32[12], index: 3, kind: input, shape index: {}]
  %s4 = inlined_call_operand.vmem [shape: f32[8], index: 4, kind: input, shape index: {}]
  %s5 = inlined_call_operand.hbm [shape: f32[2,8,256], index: 5, kind: output, shape index: {}]
  %s6 = sld [smem:[#allocation0]]
  $region87: #{tpu_custom_call.1} parent=0
    _
  %s8 = ssub.s32 1, %s6
  %s9 = scalar_select 0, %s8, %s6
  $region1: #{tpu_custom_call.1} parent=0
    #allocation5 [shape = 'u8[65536]{0}', space=vmem, size = 0x10000, scoped, tag = 'input window, operand 0']
    #allocation6 [shape = 's32[2]{0}', space=sflag, size = 0x8, scoped, tag = 'scoped memory for tpu_custom_call.1']
    #allocation7 [shape = 's32[2]{0}', space=sflag, size = 0x8, scoped, tag = 'scoped memory for tpu_custom_call.1']
    #allocation8 [shape = 's32[2]{0}', space=sflag, size = 0x8, scoped, tag = 'scoped memory for tpu_custom_call.1']
    #allocation9 [shape = 'u8[8192]{0}', space=vmem, size = 0x2000, scoped, tag = 'input window, operand 1, single buffered']
    #allocation10 [shape = 's32[1]{0}', space=sflag, size = 0x4, scoped, tag = 'scoped memory for tpu_custom_call.1']
    #allocation11 [shape = 'u8[512]{0}', space=smem, size = 0x200, scoped, tag = 'input window, operand 2, single buffered']
    #allocation12 [shape = 'u8[512]{0}', space=smem, size = 0x200, scoped, tag = 'input window, operand 3, single buffered']
    #allocation13 [shape = 's32[1]{0}', space=sflag, size = 0x4, scoped, tag = 'scoped memory for tpu_custom_call.1']
    #allocation14 [shape = 'u8[512]{0}', space=smem, size = 0x200, scoped, tag = 'input window, operand 4, single buffered']
    #allocation15 [shape = 'u8[16384]{0}', space=vmem, size = 0x4000, scoped, tag = 'output window, operand 0']
    %10 = vsyncpa [#allocation6], 0
    %s11 = scalar_lea.sflag [#allocation6], 1
    %12 = vsyncpa %s11, 0
    %13 = vsyncpa [#allocation10], 0
    %14 = vsyncpa [#allocation8], 0
    %15 = vsyncpa [#allocation13], 0
    %16 = vsyncpa [#allocation7], 0
    %s17 = scalar_lea.sflag [#allocation7], 1
    %18 = vsyncpa %s17, 0
    loop: start=0, step=1, limit=4
    $region2: #{tpu_custom_call.1} parent=1 // loop_pre_header
      _
    $region3: #{tpu_custom_call.1} parent=1 // loop_header
      %s20 = sphi 0, %s24
      %p21 = scmp.ge.s32.totalorder %s20, 4
      %s30 = sphi 0, %s32
      %s33 = sphi 0, %s30
      %s34 = sphi 0, %s33
      %s50 = sphi 0, %s34
      %s54 = sphi 0, %s54
      %s56 = sphi 0, %s54
      %s57 = sphi 0, %s56
      %s71 = sphi 0, %s57
      %s75 = sphi 0, %s75
      %s77 = sphi 0, %s75
      %s78 = sphi 0, %s77
      %s92 = sphi 0, %s78
      %s96 = sphi 0, %s96
      %s98 = sphi 0, %s96
      %s99 = sphi 0, %s98
      %s113 = sphi 0, %s99
      %s117 = sphi 0, %s117
      %s119 = sphi 0, %s117
      %s120 = sphi 0, %s119
      %s134 = sphi 0, %s120
      %s140 = sphi 0, %s142
      %s143 = sphi 0, %s140
      %s144 = sphi 0, %s143
      %s160 = sphi 0, %s144
    $region4: #{tpu_custom_call.1} parent=1 // loop_header_branch
      %23 = sbr.rel (%p21) target = $region8
    $region5: #{tpu_custom_call.1} parent=1 // loop_body
      %s25 = ssub.s32 %s20, 1
      %s26 = ssub.s32 %s20, 2
      %s27 = sadd.s32 %s20, 1
      %s28 = ssub.s32 %s20, %s27
      %p29 = scmp.eq.s32.totalorder %s28, 0
      %s31 = sadd.s32 %s30, 1
      %s32 = scalar_select %p29, %s30, %s31
      %p35 = pneg %p29
      %p36 = scmp.eq.s32.totalorder %s20, 1
      %p37 = por %p35, %p36
      %p38 = scmp.ne.s32.totalorder %s30, %s33
      %p39 = scmp.eq.s32.totalorder %s20, 0
      %p40 = por %p38, %p39
      %p41 = scmp.ne.s32.totalorder %s30, %s33
      %p42 = scmp.eq.s32.totalorder %s25, 1
      %p43 = por %p41, %p42
      %p44 = scmp.ne.s32.totalorder %s33, %s34
      %p45 = scmp.eq.s32.totalorder %s25, 0
      %p46 = por %p44, %p45
      %p47 = scmp.ne.s32.totalorder %s33, %s34
      %p48 = scmp.eq.s32.totalorder %s26, 1
      %p49 = por %p47, %p48
      %p51 = scmp.ne.s32.totalorder %s34, %s50
      %p52 = scmp.eq.s32.totalorder %s26, 0
      %p53 = por %p51, %p52
      %s55 = sadd.s32 %s54, 1
      %p58 = scmp.eq.s32.totalorder %s20, 1
      %p59 = scmp.ne.s32.totalorder %s54, %s56
      %p60 = scmp.eq.s32.totalorder %s20, 0
      %p61 = por %p59, %p60
      %p62 = scmp.ne.s32.totalorder %s54, %s56
      %p63 = scmp.eq.s32.totalorder %s25, 1
      %p64 = por %p62, %p63
      %p65 = scmp.ne.s32.totalorder %s56, %s57
      %p66 = scmp.eq.s32.totalorder %s25, 0
      %p67 = por %p65, %p66
      %p68 = scmp.ne.s32.totalorder %s56, %s57
      %p69 = scmp.eq.s32.totalorder %s26, 1
      %p70 = por %p68, %p69
      %p72 = scmp.ne.s32.totalorder %s57, %s71
      %p73 = scmp.eq.s32.totalorder %s26, 0
      %p74 = por %p72, %p73
      %s76 = sadd.s32 %s75, 1
      %p79 = scmp.eq.s32.totalorder %s20, 1
      %p80 = scmp.ne.s32.totalorder %s75, %s77
      %p81 = scmp.eq.s32.totalorder %s20, 0
      %p82 = por %p80, %p81
      %p83 = scmp.ne.s32.totalorder %s75, %s77
      %p84 = scmp.eq.s32.totalorder %s25, 1
      %p85 = por %p83, %p84
      %p86 = scmp.ne.s32.totalorder %s77, %s78
      %p87 = scmp.eq.s32.totalorder %s25, 0
      %p88 = por %p86, %p87
      %p89 = scmp.ne.s32.totalorder %s77, %s78
      %p90 = scmp.eq.s32.totalorder %s26, 1
      %p91 = por %p89, %p90
      %p93 = scmp.ne.s32.totalorder %s78, %s92
      %p94 = scmp.eq.s32.totalorder %s26, 0
      %p95 = por %p93, %p94
      %s97 = sadd.s32 %s96, 1
      %p100 = scmp.eq.s32.totalorder %s20, 1
      %p101 = scmp.ne.s32.totalorder %s96, %s98
      %p102 = scmp.eq.s32.totalorder %s20, 0
      %p103 = por %p101, %p102
      %p104 = scmp.ne.s32.totalorder %s96, %s98
      %p105 = scmp.eq.s32.totalorder %s25, 1
      %p106 = por %p104, %p105
      %p107 = scmp.ne.s32.totalorder %s98, %s99
      %p108 = scmp.eq.s32.totalorder %s25, 0
      %p109 = por %p107, %p108
      %p110 = scmp.ne.s32.totalorder %s98, %s99
      %p111 = scmp.eq.s32.totalorder %s26, 1
      %p112 = por %p110, %p111
      %p114 = scmp.ne.s32.totalorder %s99, %s113
      %p115 = scmp.eq.s32.totalorder %s26, 0
      %p116 = por %p114, %p115
      %s118 = sadd.s32 %s117, 1
      %p121 = scmp.eq.s32.totalorder %s20, 1
      %p122 = scmp.ne.s32.totalorder %s117, %s119
      %p123 = scmp.eq.s32.totalorder %s20, 0
      %p124 = por %p122, %p123
      %p125 = scmp.ne.s32.totalorder %s117, %s119
      %p126 = scmp.eq.s32.totalorder %s25, 1
      %p127 = por %p125, %p126
      %p128 = scmp.ne.s32.totalorder %s119, %s120
      %p129 = scmp.eq.s32.totalorder %s25, 0
      %p130 = por %p128, %p129
      %p131 = scmp.ne.s32.totalorder %s119, %s120
      %p132 = scmp.eq.s32.totalorder %s26, 1
      %p133 = por %p131, %p132
      %p135 = scmp.ne.s32.totalorder %s120, %s134
      %p136 = scmp.eq.s32.totalorder %s26, 0
      %p137 = por %p135, %p136
      %s138 = ssub.s32 %s20, %s27
      %p139 = scmp.eq.s32.totalorder %s138, 0
      %s141 = sadd.s32 %s140, 1
      %s142 = scalar_select %p139, %s140, %s141
      %p145 = pneg %p139
      %p146 = scmp.eq.s32.totalorder %s20, 1
      %p147 = por %p145, %p146
      %p148 = scmp.ne.s32.totalorder %s140, %s143
      %p149 = scmp.eq.s32.totalorder %s20, 0
      %p150 = por %p148, %p149
      %p151 = scmp.ne.s32.totalorder %s140, %s143
      %p152 = scmp.eq.s32.totalorder %s25, 1
      %p153 = por %p151, %p152
      %p154 = scmp.ne.s32.totalorder %s143, %s144
      %p155 = scmp.eq.s32.totalorder %s25, 0
      %p156 = por %p154, %p155
      %p157 = scmp.ne.s32.totalorder %s143, %s144
      %p158 = scmp.eq.s32.totalorder %s26, 1
      %p159 = por %p157, %p158
      %p161 = scmp.ne.s32.totalorder %s144, %s160
      %p162 = scmp.eq.s32.totalorder %s26, 0
      %p163 = por %p161, %p162
      %p164 = scmp.le.s32.totalorder 1, %s20
      %p165 = scmp.lt.s32.totalorder %s20, 3
      %p166 = pnand %p164, %p165
      %p167 = pneg %p166
      // Predicated region
      $region9: #{tpu_custom_call.1} parent=5 // pred_check
        _
      $region10: #{tpu_custom_call.1} parent=5 // pred_check_branch
        %169 = sbr.rel (%p166) target = $region12
      $region11: #{tpu_custom_call.1} parent=5 // pred_region
        %s170 = ssub.s32 %s20, 1
        // Predicated region
        $region13: #{tpu_custom_call.1} parent=11 // pred_check
          %p171 = pneg %p67
        $region14: #{tpu_custom_call.1} parent=11 // pred_check_branch
          %173 = sbr.rel (%p171) target = $region16
        $region15: #{tpu_custom_call.1} parent=11 // pred_region
          %s175 = ssub.s32 256, 256
          %176 = vsyncadd [#allocation10], %s175
          %s178 = sshll.u32 [#allocation9], 4
          %s179 = int_to_ptr.vmem [resolvable:$true] %s178
          %181 = dma.hbm_to_vmem [thread:$0]  %s1, 256, %s179, [#allocation10]
        $region16: #{tpu_custom_call.1} parent=11 // pred_fallthru
          _
        // Predicated region
        $region17: #{tpu_custom_call.1} parent=11 // pred_check
          %p182 = pneg %p88
        $region18: #{tpu_custom_call.1} parent=11 // pred_check_branch
          %184 = sbr.rel (%p182) target = $region20
        $region19: #{tpu_custom_call.1} parent=11 // pred_region
          %s186 = ssub.s32 16, 16
          %187 = vsyncadd [#allocation8], %s186
          %s189 = sshll.u32 %s2, 4
          %s190 = int_to_ptr.vmem [resolvable:$true] %s189
          %192 = dma.vmem_to_smem %s190, 16, [#allocation11], [#allocation8]
        $region20: #{tpu_custom_call.1} parent=11 // pred_fallthru
          _
        // Predicated region
        $region21: #{tpu_custom_call.1} parent=11 // pred_check
          %p193 = pneg %p109
        $region22: #{tpu_custom_call.1} parent=11 // pred_check_branch
          %195 = sbr.rel (%p193) target = $region24
        $region23: #{tpu_custom_call.1} parent=11 // pred_region
          %s197 = ssub.s32 16, 16
          %198 = vsyncadd [#allocation13], %s197
          %s200 = sshll.u32 %s3, 4
          %s201 = int_to_ptr.vmem [resolvable:$true] %s200
          %203 = dma.vmem_to_smem %s201, 16, [#allocation12], [#allocation13]
        $region24: #{tpu_custom_call.1} parent=11 // pred_fallthru
          _
        // Predicated region
        $region25: #{tpu_custom_call.1} parent=11 // pred_check
          %p204 = pneg %p130
        $region26: #{tpu_custom_call.1} parent=11 // pred_check_branch
          %206 = sbr.rel (%p204) target = $region28
        $region27: #{tpu_custom_call.1} parent=11 // pred_region
          %s208 = ssub.s32 16, 16
          %209 = vsyncadd [#allocation13], %s208
          %s211 = sshll.u32 %s4, 4
          %s212 = int_to_ptr.vmem [resolvable:$true] %s211
          %214 = dma.vmem_to_smem %s212, 16, [#allocation14], [#allocation13]
        $region28: #{tpu_custom_call.1} parent=11 // pred_fallthru
          _
      $region12: #{tpu_custom_call.1} parent=5 // pred_fallthru
        _
      %p215 = scmp.lt.s32.totalorder %s20, 2
      // Predicated region
      $region29: #{tpu_custom_call.1} parent=5 // pred_check
        %p216 = pneg %p215
      $region30: #{tpu_custom_call.1} parent=5 // pred_check_branch
        %218 = sbr.rel (%p216) target = $region32
      $region31: #{tpu_custom_call.1} parent=5 // pred_region
        // Predicated region
        $region33: #{tpu_custom_call.1} parent=31 // pred_check
          %p219 = pneg %p40
        $region34: #{tpu_custom_call.1} parent=31 // pred_check_branch
          %221 = sbr.rel (%p219) target = $region36
        $region35: #{tpu_custom_call.1} parent=31 // pred_region
          %s222 = sand.u32 %s30, 1
          %s223 = scalar_lea.sflag [#allocation6], %s222
          %s224 = sand.u32 %s30, 1
          %s225 = smul.addr %s224, 64
          %s226 = scalar_lea.vmem [#allocation5], %s225
          %s228 = ssub.s32 1024, 1024
          %229 = vsyncadd %s223, %s228
          %s230 = smul.addr %s20, 8
          %s231 = smul.addr %s230, 128
          %s232 = scalar_lea.hbm %s0, %s231
          %s233 = sshll.u32 %s226, 4
          %s234 = int_to_ptr.vmem [resolvable:$true] %s233
          %239 = dma.hbm_to_vmem [thread:$0]  %s232, 1024, %s234, %s223, 256, 256, 16
        $region36: #{tpu_custom_call.1} parent=31 // pred_fallthru
          _
      $region32: #{tpu_custom_call.1} parent=5 // pred_fallthru
        _
      %p240 = scmp.le.s32.totalorder 1, %s20
      %p241 = scmp.lt.s32.totalorder %s20, 3
      %p242 = pnand %p240, %p241
      %p243 = pneg %p242
      // Predicated region
      $region37: #{tpu_custom_call.1} parent=5 // pred_check
        _
      $region38: #{tpu_custom_call.1} parent=5 // pred_check_branch
        %245 = sbr.rel (%p242) target = $region40
      $region39: #{tpu_custom_call.1} parent=5 // pred_region
        %s246 = ssub.s32 %s20, 1
        %s247 = sand.u32 %s33, 1
        %s248 = scalar_lea.sflag [#allocation6], %s247
        %s249 = sand.u32 %s33, 1
        %s250 = smul.addr %s249, 64
        %s251 = scalar_lea.vmem [#allocation5], %s250
        // Predicated region
        $region41: #{tpu_custom_call.1} parent=39 // pred_check
          %p252 = pneg %p46
        $region42: #{tpu_custom_call.1} parent=39 // pred_check_branch
          %254 = sbr.rel (%p252) target = $region44
        $region43: #{tpu_custom_call.1} parent=39 // pred_region
          %255 = dma.done %s248, 1024
        $region44: #{tpu_custom_call.1} parent=39 // pred_fallthru
          _
        // Predicated region
        $region45: #{tpu_custom_call.1} parent=39 // pred_check
          %p256 = pneg %p67
        $region46: #{tpu_custom_call.1} parent=39 // pred_check_branch
          %258 = sbr.rel (%p256) target = $region48
        $region47: #{tpu_custom_call.1} parent=39 // pred_region
          %259 = dma.done [#allocation10], 256
        $region48: #{tpu_custom_call.1} parent=39 // pred_fallthru
          _
        // Predicated region
        $region49: #{tpu_custom_call.1} parent=39 // pred_check
          %p260 = pneg %p88
        $region50: #{tpu_custom_call.1} parent=39 // pred_check_branch
          %262 = sbr.rel (%p260) target = $region52
        $region51: #{tpu_custom_call.1} parent=39 // pred_region
          %263 = dma.done [#allocation8], 16
        $region52: #{tpu_custom_call.1} parent=39 // pred_fallthru
          _
        // Predicated region
        $region53: #{tpu_custom_call.1} parent=39 // pred_check
          %p264 = pneg %p109
        $region54: #{tpu_custom_call.1} parent=39 // pred_check_branch
          %266 = sbr.rel (%p264) target = $region56
        $region55: #{tpu_custom_call.1} parent=39 // pred_region
          %267 = dma.done [#allocation13], 16
        $region56: #{tpu_custom_call.1} parent=39 // pred_fallthru
          _
        // Predicated region
        $region57: #{tpu_custom_call.1} parent=39 // pred_check
          %p268 = pneg %p130
        $region58: #{tpu_custom_call.1} parent=39 // pred_check_branch
          %270 = sbr.rel (%p268) target = $region60
        $region59: #{tpu_custom_call.1} parent=39 // pred_region
          %271 = dma.done [#allocation13], 16
        $region60: #{tpu_custom_call.1} parent=39 // pred_fallthru
          _
        %272 = sfence
        %s273 = sand.u32 %s33, 1
        %s274 = scalar_lea.sflag [#allocation6], %s273
        %s275 = sand.u32 %s33, 1
        %s276 = smul.addr %s275, 64
        %s277 = scalar_lea.vmem [#allocation5], %s276
        %p278 = pneg %p46
        %p279 = pneg %p43
        %p280 = pneg %p67
        %p281 = pneg %p64
        %p282 = pneg %p88
        %p283 = pneg %p85
        %p284 = pneg %p109
        %p285 = pneg %p106
        %p286 = pneg %p130
        %p287 = pneg %p127
        %p288 = pneg %p156
        %p289 = pneg %p153
        %s290 = sand.u32 %s143, 1
        %s291 = scalar_lea.sflag [#allocation7], %s290
        %s292 = sand.u32 %s143, 1
        %s293 = smul.addr %s292, 16
        %s294 = scalar_lea.vmem [#allocation15], %s293
        %v295 = vld [vmem:[%s251] sm:$0xff]
        %v296 = vld [vmem:[%s251 + $0x8] sm:$0xff]
        loop: start=1, step=1, limit=4
        $region61: #{tpu_custom_call.1} parent=39 // loop_pre_header
          _
        $region62: #{tpu_custom_call.1} parent=39 // loop_header
          %s298 = sphi 1, %s302
          %p299 = scmp.ge.s32.totalorder %s298, 4
          %v303 = vphi %v295, %v310
          %v304 = vphi %v296, %v311
        $region63: #{tpu_custom_call.1} parent=39 // loop_header_branch
          %301 = sbr.rel (%p299) target = $region67
        $region64: #{tpu_custom_call.1} parent=39 // loop_body
          %s305 = smul.u32 %s298, 2
          %s306 = smul.addr %s305, 8
          %s307 = scalar_lea.vmem %s251, %s306 [#allocation5]
          %v308 = vld [vmem:[%s307] sm:$0xff]
          %v309 = vld [vmem:[%s307 + $0x8] sm:$0xff]
          %v310 = vadd.f32 %v303, %v308
          %v311 = vadd.f32 %v304, %v309
        $region65: #{tpu_custom_call.1} parent=39 // loop_footer
          %s302 = sadd.s32 1, %s298
        $region66: #{tpu_custom_call.1} parent=39 // loop_footer_branch
          %297 = sbr.rel target = $region62
        $region67: #{tpu_custom_call.1} parent=39 // loop_exit
          _
        %s312 = scalar_lea.vmem [#allocation9], 3
        %v313 = vld [vmem:[%s312] ss:$8 sm:$0x3]
        %315 = vrot.lane.b32.xlu0 %v304, 1
        %v316 = vpop.permute.xlu0 %315
        %319 = vrot.lane.b32.xlu0 %v303, 1
        %v320 = vpop.permute.xlu0 %319
        %vm321 = vcmask 7168
        %v322 = vsel %vm321, %v320, %v316
        %v325 = vsel %vm321, %v316, %v320
        %v327 = vlaneseq
        %v328 = vshrl.u32 %v327, 7
        %v329 = vsub.s32 0, %v328
        %v330 = vrot.slane %v313, %v329
        %v331 = vlaneseq
        %v332 = vshrl.u32 %v331, 7
        %v333 = vsub.s32 1, %v332
        %v334 = vrot.slane %v313, %v333
        %v337 = vmul.f32 %v325, %v330
        %v338 = vmul.f32 %v322, %v334
        %v339 = vmul.f32 %v303, 2.0
        %v340 = vmul.f32 %v304, 2.0
        %v341 = vadd.f32 %v337, %v339
        %v342 = vadd.f32 %v338, %v340
        %s343 = scalar_lea.vmem [#allocation9], 4
        %v344 = vld [vmem:[%s343] ss:$8 sm:$0x3]
        %345 = vrot.lane.b32.xlu0 %v303, 127
        %v346 = vpop.permute.xlu0 %345
        %347 = vrot.lane.b32.xlu0 %v304, 127
        %v348 = vpop.permute.xlu0 %347
        %vm349 = vcmask 1039360
        %v350 = vsel %vm349, %v346, %v348
        %v354 = vsel %vm349, %v348, %v346
        %v356 = vlaneseq
        %v357 = vshrl.u32 %v356, 7
        %v358 = vsub.s32 0, %v357
        %v359 = vrot.slane %v344, %v358
        %v360 = vlaneseq
        %v361 = vshrl.u32 %v360, 7
        %v362 = vsub.s32 1, %v361
        %v363 = vrot.slane %v344, %v362
        %v366 = vmul.f32 %v350, %v359
        %v367 = vmul.f32 %v354, %v363
        %v368 = vadd.f32 %v341, %v366
        %v369 = vadd.f32 %v342, %v367
        %s370 = scalar_lea.vmem [#allocation9], 1
        %v371 = vld [vmem:[%s370] ss:$8 sm:$0x3]
        %372 = vrot.lane.b32.xlu0 %v304, 16
        %v373 = vpop.permute.xlu0 %372
        %375 = vrot.lane.b32.xlu0 %v303, 16
        %v376 = vpop.permute.xlu0 %375
        %vm377 = vcmask 130048
        %v378 = vsel %vm377, %v376, %v373
        %v381 = vsel %vm377, %v373, %v376
        %v383 = vlaneseq
        %v384 = vshrl.u32 %v383, 7
        %v385 = vsub.s32 0, %v384
        %v386 = vrot.slane %v371, %v385
        %v387 = vlaneseq
        %v388 = vshrl.u32 %v387, 7
        %v389 = vsub.s32 1, %v388
        %v390 = vrot.slane %v371, %v389
        %v393 = vmul.f32 %v381, %v386
        %v394 = vmul.f32 %v378, %v390
        %v395 = vadd.f32 %v393, %v339
        %v396 = vadd.f32 %v394, %v340
        %s397 = scalar_lea.vmem [#allocation9], 6
        %v398 = vld [vmem:[%s397] ss:$8 sm:$0x3]
        %399 = vrot.lane.b32.xlu0 %v303, 112
        %v400 = vpop.permute.xlu0 %399
        %401 = vrot.lane.b32.xlu0 %v304, 112
        %v402 = vpop.permute.xlu0 %401
        %vm403 = vcmask 916480
        %v404 = vsel %vm403, %v400, %v402
        %v408 = vsel %vm403, %v402, %v400
        %v410 = vlaneseq
        %v411 = vshrl.u32 %v410, 7
        %v412 = vsub.s32 0, %v411
        %v413 = vrot.slane %v398, %v412
        %v414 = vlaneseq
        %v415 = vshrl.u32 %v414, 7
        %v416 = vsub.s32 1, %v415
        %v417 = vrot.slane %v398, %v416
        %v420 = vmul.f32 %v404, %v413
        %v421 = vmul.f32 %v408, %v417
        %v422 = vadd.f32 %v395, %v420
        %v423 = vadd.f32 %v396, %v421
        %425 = vrot.lane.b32.xlu0 %v369, 16
        %v426 = vpop.permute.xlu0 %425
        %429 = vrot.lane.b32.xlu0 %v368, 16
        %v430 = vpop.permute.xlu0 %429
        %v431 = vsel %vm377, %v430, %v426
        %v434 = vsel %vm377, %v426, %v430
        %v435 = vmul.f32 %v434, %v386
        %v436 = vmul.f32 %v431, %v390
        %v437 = vmul.f32 %v368, 2.0
        %v438 = vmul.f32 %v369, 2.0
        %v439 = vadd.f32 %v435, %v437
        %v440 = vadd.f32 %v436, %v438
        %441 = vrot.lane.b32.xlu0 %v368, 112
        %v442 = vpop.permute.xlu0 %441
        %443 = vrot.lane.b32.xlu0 %v369, 112
        %v444 = vpop.permute.xlu0 %443
        %v445 = vsel %vm403, %v442, %v444
        %v449 = vsel %vm403, %v444, %v442
        %v450 = vmul.f32 %v445, %v413
        %v451 = vmul.f32 %v449, %v417
        %v452 = vadd.f32 %v439, %v450
        %v453 = vadd.f32 %v440, %v451
        %455 = vrot.lane.b32.xlu0 %v423, 1
        %v456 = vpop.permute.xlu0 %455
        %459 = vrot.lane.b32.xlu0 %v422, 1
        %v460 = vpop.permute.xlu0 %459
        %v461 = vsel %vm321, %v460, %v456
        %v464 = vsel %vm321, %v456, %v460
        %v465 = vmul.f32 %v464, %v330
        %v466 = vmul.f32 %v461, %v334
        %467 = vrot.lane.b32.xlu0 %v422, 127
        %v468 = vpop.permute.xlu0 %467
        %469 = vrot.lane.b32.xlu0 %v423, 127
        %v470 = vpop.permute.xlu0 %469
        %v471 = vsel %vm349, %v468, %v470
        %v475 = vsel %vm349, %v470, %v468
        %v476 = vmul.f32 %v471, %v359
        %v477 = vmul.f32 %v475, %v363
        %v478 = vsub.f32 %v465, %v476
        %v479 = vsub.f32 %v466, %v477
        %v480 = vsub.f32 %v435, %v450
        %v481 = vsub.f32 %v436, %v451
        %v484 = vrot.slane %v452, 7
        %v485 = vrot.slane %v453, 7
        %vm488 = vcmask 1040384
        %v489 = vsel %vm488, 0.0, %v484
        %v490 = vsel %vm488, 0.0, %v485
        %v491 = vrot.slane %v452, 1
        %v492 = vrot.slane %v453, 1
        %vm495 = vcmask 1046528
        %v496 = vsel %vm495, %v491, 0.0
        %v497 = vsel %vm495, %v492, 0.0
        %v498 = vsub.f32 %v489, %v496
        %v499 = vsub.f32 %v490, %v497
        %s500 = sld [smem:[#allocation14]]
        %v501 = vstv %s500
        %v502 = vmul.f32 %v478, %v501
        %v503 = vmul.f32 %v479, %v501
        %s504 = sld [smem:[#allocation14 + $0x1]]
        %v505 = vstv %s504
        %v506 = vadd.f32 %v502, %v505
        %v507 = vadd.f32 %v503, %v505
        %s508 = sld [smem:[#allocation14 + $0x2]]
        %v509 = vstv %s508
        %v510 = vmul.f32 %v480, %v509
        %v511 = vmul.f32 %v481, %v509
        %s512 = sld [smem:[#allocation14 + $0x3]]
        %v513 = vstv %s512
        %v514 = vadd.f32 %v510, %v513
        %v515 = vadd.f32 %v511, %v513
        %s516 = sld [smem:[#allocation14 + $0x4]]
        %v517 = vstv %s516
        %v518 = vmul.f32 %v498, %v517
        %v519 = vmul.f32 %v499, %v517
        %s520 = sld [smem:[#allocation14 + $0x5]]
        %v521 = vstv %s520
        %v522 = vadd.f32 %v518, %v521
        %v523 = vadd.f32 %v519, %v521
        %v524 = vmul.f32 %v506, %v506
        %v525 = vmul.f32 %v507, %v507
        %v526 = vmul.f32 %v514, %v514
        %v527 = vmul.f32 %v515, %v515
        %v528 = vadd.f32 %v524, %v526
        %v529 = vadd.f32 %v525, %v527
        %v530 = vmul.f32 %v522, %v522
        %v531 = vmul.f32 %v523, %v523
        %v532 = vadd.f32 %v528, %v530
        %v533 = vadd.f32 %v529, %v531
        %v534 = vrsqrt.pop %v532
        %v535 = vmul.f32 %v532, %v534
        %vm536 = vcmp.eq.f32.partialorder %v532, inf
        %v537 = vsel %vm536, %v532, %v535
        %vm538 = vcmp.eq.f32.partialorder %v532, 0.0
        %v539 = vand.u32 %v532, 2147483648
        %v540 = vsel %vm538, %v539, %v537
        %v541 = vrsqrt.pop %v533
        %v542 = vmul.f32 %v533, %v541
        %vm543 = vcmp.eq.f32.partialorder %v533, inf
        %v544 = vsel %vm543, %v533, %v542
        %vm545 = vcmp.eq.f32.partialorder %v533, 0.0
        %v546 = vand.u32 %v533, 2147483648
        %v547 = vsel %vm545, %v546, %v544
        %v548 = vxor.u32 %v540, 2147483648
        %v549 = vxor.u32 %v547, 2147483648
        %v550 = vmul.f32 %v548, 1.442695
        %v551 = vpow.pop %v550
        %v552 = vmul.f32 %v549, 1.442695
        %v553 = vpow.pop %v552
        %v554 = vadd.f32 %v551, 1.0
        %v555 = vadd.f32 %v553, 1.0
        %v556 = vrcp.pop %v554
        %v557 = vmul.f32 1.0, %v556
        %v558 = vrcp.pop %v555
        %v559 = vmul.f32 1.0, %v558
        %560 = vst [vmem:[#allocation2] sm:$0xff] 0.0
        %561 = vst [vmem:[#allocation2 + $0x8] sm:$0xff] 0.0
        %562 = vst [vmem:[#allocation3] sm:$0xff] 0.0
        %563 = vst [vmem:[#allocation3 + $0x8] sm:$0xff] 0.0
        %564 = vst [vmem:[#allocation4] sm:$0xff] 0.0
        %565 = vst [vmem:[#allocation4 + $0x8] sm:$0xff] 0.0
        loop: start=0, step=1, limit=4
        $region68: #{tpu_custom_call.1} parent=39 // loop_pre_header
          _
        $region69: #{tpu_custom_call.1} parent=39 // loop_header
          %s567 = sphi 0, %s571
          %p568 = scmp.ge.s32.totalorder %s567, 4
        $region70: #{tpu_custom_call.1} parent=39 // loop_header_branch
          %570 = sbr.rel (%p568) target = $region74
        $region71: #{tpu_custom_call.1} parent=39 // loop_body
          %s572 = smul.u32 %s567, 2
          %s573 = smul.addr %s572, 8
          %s574 = scalar_lea.vmem %s251, %s573 [#allocation5]
          %v575 = vld [vmem:[%s574] sm:$0xff]
          %v576 = vld [vmem:[%s574 + $0x8] sm:$0xff]
          %v577 = vmul.f32 %v557, %v575
          %v578 = vmul.f32 %v559, %v576
          %s579 = sld [smem:[#allocation12 + %s567]]
          %v580 = vstv %s579
          %v581 = vmul.f32 %v577, %v580
          %v582 = vmul.f32 %v578, %v580
          %s583 = sadd.s32 %s567, 4
          %s584 = sld [smem:[#allocation12 + %s583]]
          %v585 = vstv %s584
          %v586 = vadd.f32 %v581, %v585
          %v587 = vadd.f32 %v582, %v585
          %v588 = vmax.f32 %v586, 0.0
          %v589 = vmax.f32 %v587, 0.0
          %s590 = sadd.s32 %s567, 8
          %s591 = sld [smem:[#allocation12 + %s590]]
          %v592 = vstv %s591
          %v593 = vmul.f32 %v592, %v575
          %v594 = vmul.f32 %v592, %v576
          %v595 = vld [vmem:[#allocation9] ss:$8 sm:$0x3]
          %597 = vrot.lane.b32.xlu0 %v589, 17
          %v598 = vpop.permute.xlu0 %597
          %601 = vrot.lane.b32.xlu0 %v588, 17
          %v602 = vpop.permute.xlu0 %601
          %vm603 = vcmask 138240
          %v604 = vsel %vm603, %v602, %v598
          %v607 = vsel %vm603, %v598, %v602
          %v609 = vlaneseq
          %v610 = vshrl.u32 %v609, 7
          %v611 = vsub.s32 0, %v610
          %v612 = vrot.slane %v595, %v611
          %v613 = vlaneseq
          %v614 = vshrl.u32 %v613, 7
          %v615 = vsub.s32 1, %v614
          %v616 = vrot.slane %v595, %v615
          %v619 = vmul.f32 %v607, %v612
          %v620 = vmul.f32 %v604, %v616
          %s621 = smul.u32 %s567, 27
          %s622 = sld [smem:[#allocation11 + %s621]]
          %v623 = vstv %s622
          %v624 = vmul.f32 %v623, %v619
          %v625 = vmul.f32 %v623, %v620
          %v626 = vadd.f32 %v624, 0.0
          %v627 = vadd.f32 %v625, 0.0
          %s628 = sadd.s32 %s621, 9
          %s629 = sld [smem:[#allocation11 + %s628]]
          %v630 = vstv %s629
          %v631 = vmul.f32 %v630, %v619
          %v632 = vmul.f32 %v630, %v620
          %v633 = vadd.f32 %v593, %v631
          %v634 = vadd.f32 %v594, %v632
          %s635 = sadd.s32 %s621, 18
          %s636 = sld [smem:[#allocation11 + %s635]]
          %v637 = vstv %s636
          %v638 = vmul.f32 %v637, %v619
          %v639 = vmul.f32 %v637, %v620
          %v640 = vadd.f32 %v638, 0.0
          %v641 = vadd.f32 %v639, 0.0
          %v642 = vld [vmem:[%s370] ss:$8 sm:$0x3]
          %643 = vrot.lane.b32.xlu0 %v589, 16
          %v644 = vpop.permute.xlu0 %643
          %646 = vrot.lane.b32.xlu0 %v588, 16
          %v647 = vpop.permute.xlu0 %646
          %v648 = vsel %vm377, %v647, %v644
          %v651 = vsel %vm377, %v644, %v647
          %v653 = vlaneseq
          %v654 = vshrl.u32 %v653, 7
          %v655 = vsub.s32 0, %v654
          %v656 = vrot.slane %v642, %v655
          %v657 = vlaneseq
          %v658 = vshrl.u32 %v657, 7
          %v659 = vsub.s32 1, %v658
          %v660 = vrot.slane %v642, %v659
          %v663 = vmul.f32 %v651, %v656
          %v664 = vmul.f32 %v648, %v660
          %s665 = sadd.s32 %s621, 1
          %s666 = sld [smem:[#allocation11 + %s665]]
          %v667 = vstv %s666
          %v668 = vmul.f32 %v667, %v663
          %v669 = vmul.f32 %v667, %v664
          %v670 = vadd.f32 %v626, %v668
          %v671 = vadd.f32 %v627, %v669
          %s672 = sadd.s32 %s621, 10
          %s673 = sld [smem:[#allocation11 + %s672]]
          %v674 = vstv %s673
          %v675 = vmul.f32 %v674, %v663
          %v676 = vmul.f32 %v674, %v664
          %v677 = vadd.f32 %v633, %v675
          %v678 = vadd.f32 %v634, %v676
          %s679 = sadd.s32 %s621, 19
          %s680 = sld [smem:[#allocation11 + %s679]]
          %v681 = vstv %s680
          %v682 = vmul.f32 %v681, %v663
          %v683 = vmul.f32 %v681, %v664
          %v684 = vadd.f32 %v640, %v682
          %v685 = vadd.f32 %v641, %v683
          %s686 = scalar_lea.vmem [#allocation9], 2
          %v687 = vld [vmem:[%s686] ss:$8 sm:$0x3]
          %688 = vrot.lane.b32.xlu0 %v589, 15
          %v689 = vpop.permute.xlu0 %688
          %691 = vrot.lane.b32.xlu0 %v588, 15
          %v692 = vpop.permute.xlu0 %691
          %vm693 = vcmask 121856
          %v694 = vsel %vm693, %v692, %v689
          %v697 = vsel %vm693, %v689, %v692
          %v699 = vlaneseq
          %v700 = vshrl.u32 %v699, 7
          %v701 = vsub.s32 0, %v700
          %v702 = vrot.slane %v687, %v701
          %v703 = vlaneseq
          %v704 = vshrl.u32 %v703, 7
          %v705 = vsub.s32 1, %v704
          %v706 = vrot.slane %v687, %v705
          %v709 = vmul.f32 %v697, %v702
          %v710 = vmul.f32 %v694, %v706
          %s711 = sadd.s32 %s621, 2
          %s712 = sld [smem:[#allocation11 + %s711]]
          %v713 = vstv %s712
          %v714 = vmul.f32 %v713, %v709
          %v715 = vmul.f32 %v713, %v710
          %v716 = vadd.f32 %v670, %v714
          %v717 = vadd.f32 %v671, %v715
          %s718 = sadd.s32 %s621, 11
          %s719 = sld [smem:[#allocation11 + %s718]]
          %v720 = vstv %s719
          %v721 = vmul.f32 %v720, %v709
          %v722 = vmul.f32 %v720, %v710
          %v723 = vadd.f32 %v677, %v721
          %v724 = vadd.f32 %v678, %v722
          %s725 = sadd.s32 %s621, 20
          %s726 = sld [smem:[#allocation11 + %s725]]
          %v727 = vstv %s726
          %v728 = vmul.f32 %v727, %v709
          %v729 = vmul.f32 %v727, %v710
          %v730 = vadd.f32 %v684, %v728
          %v731 = vadd.f32 %v685, %v729
          %v732 = vld [vmem:[%s312] ss:$8 sm:$0x3]
          %733 = vrot.lane.b32.xlu0 %v589, 1
          %v734 = vpop.permute.xlu0 %733
          %736 = vrot.lane.b32.xlu0 %v588, 1
          %v737 = vpop.permute.xlu0 %736
          %v738 = vsel %vm321, %v737, %v734
          %v741 = vsel %vm321, %v734, %v737
          %v743 = vlaneseq
          %v744 = vshrl.u32 %v743, 7
          %v745 = vsub.s32 0, %v744
          %v746 = vrot.slane %v732, %v745
          %v747 = vlaneseq
          %v748 = vshrl.u32 %v747, 7
          %v749 = vsub.s32 1, %v748
          %v750 = vrot.slane %v732, %v749
          %v753 = vmul.f32 %v741, %v746
          %v754 = vmul.f32 %v738, %v750
          %s755 = sadd.s32 %s621, 3
          %s756 = sld [smem:[#allocation11 + %s755]]
          %v757 = vstv %s756
          %v758 = vmul.f32 %v757, %v753
          %v759 = vmul.f32 %v757, %v754
          %v760 = vadd.f32 %v716, %v758
          %v761 = vadd.f32 %v717, %v759
          %s762 = sadd.s32 %s621, 12
          %s763 = sld [smem:[#allocation11 + %s762]]
          %v764 = vstv %s763
          %v765 = vmul.f32 %v764, %v753
          %v766 = vmul.f32 %v764, %v754
          %v767 = vadd.f32 %v723, %v765
          %v768 = vadd.f32 %v724, %v766
          %s769 = sadd.s32 %s621, 21
          %s770 = sld [smem:[#allocation11 + %s769]]
          %v771 = vstv %s770
          %v772 = vmul.f32 %v771, %v753
          %v773 = vmul.f32 %v771, %v754
          %v774 = vadd.f32 %v730, %v772
          %v775 = vadd.f32 %v731, %v773
          %s776 = sadd.s32 %s621, 4
          %s777 = sld [smem:[#allocation11 + %s776]]
          %v778 = vstv %s777
          %v779 = vmul.f32 %v778, %v588
          %v780 = vmul.f32 %v778, %v589
          %v781 = vadd.f32 %v760, %v779
          %v782 = vadd.f32 %v761, %v780
          %s783 = sadd.s32 %s621, 13
          %s784 = sld [smem:[#allocation11 + %s783]]
          %v785 = vstv %s784
          %v786 = vmul.f32 %v785, %v588
          %v787 = vmul.f32 %v785, %v589
          %v788 = vadd.f32 %v767, %v786
          %v789 = vadd.f32 %v768, %v787
          %s790 = sadd.s32 %s621, 22
          %s791 = sld [smem:[#allocation11 + %s790]]
          %v792 = vstv %s791
          %v793 = vmul.f32 %v792, %v588
          %v794 = vmul.f32 %v792, %v589
          %v795 = vadd.f32 %v774, %v793
          %v796 = vadd.f32 %v775, %v794
          %v797 = vld [vmem:[%s343] ss:$8 sm:$0x3]
          %798 = vrot.lane.b32.xlu0 %v588, 127
          %v799 = vpop.permute.xlu0 %798
          %800 = vrot.lane.b32.xlu0 %v589, 127
          %v801 = vpop.permute.xlu0 %800
          %v802 = vsel %vm349, %v799, %v801
          %v806 = vsel %vm349, %v801, %v799
          %v808 = vlaneseq
          %v809 = vshrl.u32 %v808, 7
          %v810 = vsub.s32 0, %v809
          %v811 = vrot.slane %v797, %v810
          %v812 = vlaneseq
          %v813 = vshrl.u32 %v812, 7
          %v814 = vsub.s32 1, %v813
          %v815 = vrot.slane %v797, %v814
          %v818 = vmul.f32 %v802, %v811
          %v819 = vmul.f32 %v806, %v815
          %s820 = sadd.s32 %s621, 5
          %s821 = sld [smem:[#allocation11 + %s820]]
          %v822 = vstv %s821
          %v823 = vmul.f32 %v822, %v818
          %v824 = vmul.f32 %v822, %v819
          %v825 = vadd.f32 %v781, %v823
          %v826 = vadd.f32 %v782, %v824
          %s827 = sadd.s32 %s621, 14
          %s828 = sld [smem:[#allocation11 + %s827]]
          %v829 = vstv %s828
          %v830 = vmul.f32 %v829, %v818
          %v831 = vmul.f32 %v829, %v819
          %v832 = vadd.f32 %v788, %v830
          %v833 = vadd.f32 %v789, %v831
          %s834 = sadd.s32 %s621, 23
          %s835 = sld [smem:[#allocation11 + %s834]]
          %v836 = vstv %s835
          %v837 = vmul.f32 %v836, %v818
          %v838 = vmul.f32 %v836, %v819
          %v839 = vadd.f32 %v795, %v837
          %v840 = vadd.f32 %v796, %v838
          %s841 = scalar_lea.vmem [#allocation9], 5
          %v842 = vld [vmem:[%s841] ss:$8 sm:$0x3]
          %843 = vrot.lane.b32.xlu0 %v588, 113
          %v844 = vpop.permute.xlu0 %843
          %845 = vrot.lane.b32.xlu0 %v589, 113
          %v846 = vpop.permute.xlu0 %845
          %vm847 = vcmask 924672
          %v848 = vsel %vm847, %v844, %v846
          %v852 = vsel %vm847, %v846, %v844
          %v854 = vlaneseq
          %v855 = vshrl.u32 %v854, 7
          %v856 = vsub.s32 0, %v855
          %v857 = vrot.slane %v842, %v856
          %v858 = vlaneseq
          %v859 = vshrl.u32 %v858, 7
          %v860 = vsub.s32 1, %v859
          %v861 = vrot.slane %v842, %v860
          %v864 = vmul.f32 %v848, %v857
          %v865 = vmul.f32 %v852, %v861
          %s866 = sadd.s32 %s621, 6
          %s867 = sld [smem:[#allocation11 + %s866]]
          %v868 = vstv %s867
          %v869 = vmul.f32 %v868, %v864
          %v870 = vmul.f32 %v868, %v865
          %v871 = vadd.f32 %v825, %v869
          %v872 = vadd.f32 %v826, %v870
          %s873 = sadd.s32 %s621, 15
          %s874 = sld [smem:[#allocation11 + %s873]]
          %v875 = vstv %s874
          %v876 = vmul.f32 %v875, %v864
          %v877 = vmul.f32 %v875, %v865
          %v878 = vadd.f32 %v832, %v876
          %v879 = vadd.f32 %v833, %v877
          %s880 = sadd.s32 %s621, 24
          %s881 = sld [smem:[#allocation11 + %s880]]
          %v882 = vstv %s881
          %v883 = vmul.f32 %v882, %v864
          %v884 = vmul.f32 %v882, %v865
          %v885 = vadd.f32 %v839, %v883
          %v886 = vadd.f32 %v840, %v884
          %v887 = vld [vmem:[%s397] ss:$8 sm:$0x3]
          %888 = vrot.lane.b32.xlu0 %v588, 112
          %v889 = vpop.permute.xlu0 %888
          %890 = vrot.lane.b32.xlu0 %v589, 112
          %v891 = vpop.permute.xlu0 %890
          %v892 = vsel %vm403, %v889, %v891
          %v896 = vsel %vm403, %v891, %v889
          %v898 = vlaneseq
          %v899 = vshrl.u32 %v898, 7
          %v900 = vsub.s32 0, %v899
          %v901 = vrot.slane %v887, %v900
          %v902 = vlaneseq
          %v903 = vshrl.u32 %v902, 7
          %v904 = vsub.s32 1, %v903
          %v905 = vrot.slane %v887, %v904
          %v908 = vmul.f32 %v892, %v901
          %v909 = vmul.f32 %v896, %v905
          %s910 = sadd.s32 %s621, 7
          %s911 = sld [smem:[#allocation11 + %s910]]
          %v912 = vstv %s911
          %v913 = vmul.f32 %v912, %v908
          %v914 = vmul.f32 %v912, %v909
          %v915 = vadd.f32 %v871, %v913
          %v916 = vadd.f32 %v872, %v914
          %s917 = sadd.s32 %s621, 16
          %s918 = sld [smem:[#allocation11 + %s917]]
          %v919 = vstv %s918
          %v920 = vmul.f32 %v919, %v908
          %v921 = vmul.f32 %v919, %v909
          %v922 = vadd.f32 %v878, %v920
          %v923 = vadd.f32 %v879, %v921
          %s924 = sadd.s32 %s621, 25
          %s925 = sld [smem:[#allocation11 + %s924]]
          %v926 = vstv %s925
          %v927 = vmul.f32 %v926, %v908
          %v928 = vmul.f32 %v926, %v909
          %v929 = vadd.f32 %v885, %v927
          %v930 = vadd.f32 %v886, %v928
          %s931 = scalar_lea.vmem [#allocation9], 7
          %v932 = vld [vmem:[%s931] ss:$8 sm:$0x3]
          %933 = vrot.lane.b32.xlu0 %v588, 111
          %v934 = vpop.permute.xlu0 %933
          %935 = vrot.lane.b32.xlu0 %v589, 111
          %v936 = vpop.permute.xlu0 %935
          %vm937 = vcmask 908288
          %v938 = vsel %vm937, %v934, %v936
          %v942 = vsel %vm937, %v936, %v934
          %v944 = vlaneseq
          %v945 = vshrl.u32 %v944, 7
          %v946 = vsub.s32 0, %v945
          %v947 = vrot.slane %v932, %v946
          %v948 = vlaneseq
          %v949 = vshrl.u32 %v948, 7
          %v950 = vsub.s32 1, %v949
          %v951 = vrot.slane %v932, %v950
          %v954 = vmul.f32 %v938, %v947
          %v955 = vmul.f32 %v942, %v951
          %s956 = sadd.s32 %s621, 8
          %s957 = sld [smem:[#allocation11 + %s956]]
          %v958 = vstv %s957
          %v959 = vmul.f32 %v958, %v954
          %v960 = vmul.f32 %v958, %v955
          %v961 = vadd.f32 %v915, %v959
          %v962 = vadd.f32 %v916, %v960
          %s963 = sadd.s32 %s621, 17
          %s964 = sld [smem:[#allocation11 + %s963]]
          %v965 = vstv %s964
          %v966 = vmul.f32 %v965, %v954
          %v967 = vmul.f32 %v965, %v955
          %v968 = vadd.f32 %v922, %v966
          %v969 = vadd.f32 %v923, %v967
          %s970 = sadd.s32 %s621, 26
          %s971 = sld [smem:[#allocation11 + %s970]]
          %v972 = vstv %s971
          %v973 = vmul.f32 %v972, %v954
          %v974 = vmul.f32 %v972, %v955
          %v975 = vadd.f32 %v929, %v973
          %v976 = vadd.f32 %v930, %v974
          %v977 = vld [vmem:[#allocation2] sm:$0xff]
          %v978 = vld [vmem:[#allocation2 + $0x8] sm:$0xff]
          %v979 = vadd.f32 %v977, %v961
          %v980 = vadd.f32 %v978, %v962
          %981 = vst [vmem:[#allocation2] sm:$0xff] %v979
          %982 = vst [vmem:[#allocation2 + $0x8] sm:$0xff] %v980
          %v983 = vld [vmem:[#allocation3] sm:$0xff]
          %v984 = vld [vmem:[#allocation3 + $0x8] sm:$0xff]
          %v985 = vadd.f32 %v983, %v968
          %v986 = vadd.f32 %v984, %v969
          %987 = vst [vmem:[#allocation3] sm:$0xff] %v985
          %988 = vst [vmem:[#allocation3 + $0x8] sm:$0xff] %v986
          %v989 = vld [vmem:[#allocation4] sm:$0xff]
          %v990 = vld [vmem:[#allocation4 + $0x8] sm:$0xff]
          %v991 = vadd.f32 %v989, %v975
          %v992 = vadd.f32 %v990, %v976
          %993 = vst [vmem:[#allocation4] sm:$0xff] %v991
          %994 = vst [vmem:[#allocation4 + $0x8] sm:$0xff] %v992
        $region72: #{tpu_custom_call.1} parent=39 // loop_footer
          %s571 = sadd.s32 1, %s567
        $region73: #{tpu_custom_call.1} parent=39 // loop_footer_branch
          %566 = sbr.rel target = $region69
        $region74: #{tpu_custom_call.1} parent=39 // loop_exit
          _
        %v995 = vld [vmem:[#allocation2] sm:$0xff]
        %v996 = vld [vmem:[#allocation2 + $0x8] sm:$0xff]
        %v999 = vrot.slane %v995, 7
        %v1000 = vrot.slane %v996, 7
        %v1003 = vsel %vm488, 0.0, %v999
        %v1004 = vsel %vm488, 0.0, %v1000
        %v1005 = vld [vmem:[#allocation3] sm:$0xff]
        %v1006 = vld [vmem:[#allocation3 + $0x8] sm:$0xff]
        %v1007 = vadd.f32 %v1003, %v1005
        %v1008 = vadd.f32 %v1004, %v1006
        %v1009 = vld [vmem:[#allocation4] sm:$0xff]
        %v1010 = vld [vmem:[#allocation4 + $0x8] sm:$0xff]
        %v1013 = vrot.slane %v1009, 1
        %v1014 = vrot.slane %v1010, 1
        %v1017 = vsel %vm495, %v1013, 0.0
        %v1018 = vsel %vm495, %v1014, 0.0
        %v1019 = vadd.f32 %v1007, %v1017
        %v1020 = vadd.f32 %v1008, %v1018
        %s1021 = sld [smem:[#allocation14 + $0x6]]
        %v1022 = vstv %s1021
        %v1023 = vmul.f32 %v1019, %v1022
        %v1024 = vmul.f32 %v1020, %v1022
        %s1025 = sld [smem:[#allocation14 + $0x7]]
        %v1026 = vstv %s1025
        %v1027 = vadd.f32 %v1023, %v1026
        %v1028 = vadd.f32 %v1024, %v1026
        %v1029 = vmax.f32 %v1027, 0.0
        %v1030 = vmax.f32 %v1028, 0.0
        %1031 = vst [vmem:[%s294] sm:$0xff] %v1029
        %1032 = vst [vmem:[%s294 + $0x8] sm:$0xff] %v1030
        %s1033 = sand.u32 %s143, 1
        %s1034 = scalar_lea.sflag [#allocation7], %s1033
        %s1035 = sand.u32 %s143, 1
        %s1036 = smul.addr %s1035, 16
        %s1037 = scalar_lea.vmem [#allocation15], %s1036
        // Predicated region
        $region75: #{tpu_custom_call.1} parent=39 // pred_check
          %p1038 = pneg %p153
        $region76: #{tpu_custom_call.1} parent=39 // pred_check_branch
          %1040 = sbr.rel (%p1038) target = $region78
        $region77: #{tpu_custom_call.1} parent=39 // pred_region
          %s1042 = ssub.s32 256, 256
          %1043 = vsyncadd %s1034, %s1042
          %s1044 = smul.addr %s25, 2
          %s1045 = smul.addr %s1044, 128
          %s1046 = scalar_lea.hbm %s5, %s1045
          %s1048 = sshll.u32 %s1037, 4
          %s1049 = int_to_ptr.vmem [resolvable:$true] %s1048
          %1051 = dma.vmem_to_hbm [thread:$0]  %s1049, 256, %s1046, %s1034
        $region78: #{tpu_custom_call.1} parent=39 // pred_fallthru
          _
      $region40: #{tpu_custom_call.1} parent=5 // pred_fallthru
        _
      %p1052 = scmp.le.s32.totalorder 2, %s20
      // Predicated region
      $region79: #{tpu_custom_call.1} parent=5 // pred_check
        %p1053 = pneg %p1052
      $region80: #{tpu_custom_call.1} parent=5 // pred_check_branch
        %1055 = sbr.rel (%p1053) target = $region82
      $region81: #{tpu_custom_call.1} parent=5 // pred_region
        %s1056 = ssub.s32 %s20, 2
        // Predicated region
        $region83: #{tpu_custom_call.1} parent=81 // pred_check
          %p1057 = pneg %p159
        $region84: #{tpu_custom_call.1} parent=81 // pred_check_branch
          %1059 = sbr.rel (%p1057) target = $region86
        $region85: #{tpu_custom_call.1} parent=81 // pred_region
          %s1060 = sand.u32 %s144, 1
          %s1061 = scalar_lea.sflag [#allocation7], %s1060
          %s1062 = sand.u32 %s144, 1
          %s1063 = smul.addr %s1062, 16
          %s1064 = scalar_lea.vmem [#allocation15], %s1063
          %1065 = dma.done %s1061, 256
        $region86: #{tpu_custom_call.1} parent=81 // pred_fallthru
          _
      $region82: #{tpu_custom_call.1} parent=5 // pred_fallthru
        _
    $region6: #{tpu_custom_call.1} parent=1 // loop_footer
      %s24 = sadd.s32 1, %s20
    $region7: #{tpu_custom_call.1} parent=1 // loop_footer_branch
      %19 = sbr.rel target = $region3
    $region8: #{tpu_custom_call.1} parent=1 // loop_exit
      _
    %1066 = vsyncpa [#allocation6], 1
    %s1067 = scalar_lea.sflag [#allocation6], 1
    %1068 = vsyncpa %s1067, 1
    %1069 = vsyncpa [#allocation10], 1
    %1070 = vsyncpa [#allocation7], 1
    %s1071 = scalar_lea.sflag [#allocation7], 1
    %1072 = vsyncpa %s1071, 1
    %1073 = vsyncpa [#allocation8], 1
    %s1074 = scalar_lea.sflag [#allocation8], 1
    %1075 = vsyncpa %s1074, 1
    %1076 = vsyncpa [#allocation13], 1

</llo_original>
